<compile_context>
chip_gen: v5e
topology: v5e:2x2
jax: 0.10.0
libtpu: 0.0.40
codegen_flags: <defaults>
</compile_context>

<pallas_src>
import jax
import jax.numpy as jnp
from jax.experimental import pallas as pl
from jax.experimental.pallas import tpu as pltpu

HIDDEN = 768            # fixed by the module: torch.nn.Linear(768, n_classes)
N_CLASSES = 6
N_CLASSES_SUB = 8       # classifier classes padded to 8 sublanes (compact weight)
N_CLASSES_PAD = 128     # lane-dense padded classifier output width
ROW_TILE = 8            # batch rows per grid step (one sublane group)
BATCH = 2
SEQ = 8
VOCAB = 128


def emo_labeller_kernel(tok_ref, emb_ref, wp_ref, bias_ref, wc_ref, out_ref):
    """Fused: one-hot embedding gather + masked-mean encode -> BERT pooler
    (tanh dense) -> dropout(eval=identity) -> compact classifier, lane-dense
    padded (R,128) output store."""
    ids = tok_ref[0]                          # (R, S) int32
    mask = tok_ref[1].astype(jnp.float32)     # (R, S) f32 (0/1)
    R, S = ids.shape
    V = emb_ref.shape[0]

    # Masked one-hot built in one shot:
    #   counts[b, v] = sum_s mask[b, s] * [ids[b, s] == v]
    v_iota = jax.lax.broadcasted_iota(jnp.int32, (R, S, V), 2)
    masked_onehot = jnp.where(ids[:, :, None] == v_iota,
                              mask[:, :, None], 0.0)            # (R, S, V) f32
    counts = jnp.sum(masked_onehot, axis=1)                     # (R, V) f32

    # attention-mask-weighted mean: scale the small (R,V) counts (EUP recip)
    denom = jnp.maximum(jnp.sum(mask, axis=1, keepdims=True), 1.0)   # (R, 1)
    counts = counts * pl.reciprocal(denom, approx=True)

    # embedding lookup + mean as one MXU matmul: (R,V) @ (V,H)
    h = jnp.dot(counts.astype(jnp.bfloat16), emb_ref[...],
                preferred_element_type=jnp.float32)             # (R, H) f32

    bp = bias_ref[:, :HIDDEN]                                   # (1, H)   f32
    bc = bias_ref[:, HIDDEN:]                                   # (1, 128) f32

    # BERT pooler head: tanh(h @ Wp + bp) -> 'pooler_output'
    pooled = jnp.tanh(
        jnp.dot(h.astype(jnp.bfloat16), wp_ref[...],
                preferred_element_type=jnp.float32) + bp)       # (R, H) f32

    # Dropout(p=0.1): identity in eval/inference mode.
    dropped = pooled

    # Classifier with compact (8, H) weight: contract H (NT matmul on MXU).
    logits8 = jax.lax.dot_general(
        dropped.astype(jnp.bfloat16), wc_ref[...],
        dimension_numbers=(((1,), (1,)), ((), ())),
        preferred_element_type=jnp.float32)                     # (R, 8)

    # zero-pad to 128 lanes in-register -> single lane-dense store
    zeros_tail = jnp.zeros((R, N_CLASSES_PAD - N_CLASSES_SUB), jnp.float32)
    out_ref[...] = jnp.concatenate([logits8, zeros_tail], axis=-1) + bc


def emo_labeller_forward(input_ids, attention_mask, params):
    """Grid over batch-row tiles; weights use constant index_maps so they are
    DMA'd once and stay resident across grid steps."""
    emb_table, wp, bias_cat, wc_t = params
    B, S = input_ids.shape
    B_pad = ((B + ROW_TILE - 1) // ROW_TILE) * ROW_TILE

    ids = input_ids.astype(jnp.int32)
    mask = attention_mask.astype(jnp.int32)
    if B_pad != B:
        ids = jnp.pad(ids, ((0, B_pad - B), (0, 0)))
        mask = jnp.pad(mask, ((0, B_pad - B), (0, 0)))
    tok = jnp.stack([ids, mask], axis=0)                        # (2, B_pad, S)

    num_tiles = B_pad // ROW_TILE
    grid_spec = pltpu.PrefetchScalarGridSpec(
        num_scalar_prefetch=0,
        grid=(num_tiles,),
        in_specs=[
            # streamed per grid step
            pl.BlockSpec((2, ROW_TILE, S), lambda i: (0, i, 0)),
            # resident weights: constant block index -> fetched once
            pl.BlockSpec((VOCAB, HIDDEN), lambda i: (0, 0)),
            pl.BlockSpec((HIDDEN, HIDDEN), lambda i: (0, 0)),
            pl.BlockSpec((1, HIDDEN + N_CLASSES_PAD), lambda i: (0, 0)),
            pl.BlockSpec((N_CLASSES_SUB, HIDDEN), lambda i: (0, 0)),
        ],
        out_specs=pl.BlockSpec((ROW_TILE, N_CLASSES_PAD), lambda i: (i, 0)),
    )

    logits_pad = pl.pallas_call(
        emo_labeller_kernel,
        out_shape=jax.ShapeDtypeStruct((B_pad, N_CLASSES_PAD), jnp.float32),
        grid_spec=grid_spec,
        compiler_params=pltpu.CompilerParams(
            dimension_semantics=("parallel",)),
    )(tok, emb_table, wp, bias_cat, wc_t)
    return logits_pad[:B, :N_CLASSES]


def make_params(key):
    """Kernel-facing stored format: bf16 weights, classifier compact/transposed
    (classes on sublanes, HIDDEN on lanes), all biases fused in one f32 row."""
    k1, k2, k3, k4, k5 = jax.random.split(key, 5)
    emb_table = (jax.random.normal(k1, (VOCAB, HIDDEN), jnp.float32)
                 * 0.02).astype(jnp.bfloat16)
    wp = (jax.random.normal(k2, (HIDDEN, HIDDEN), jnp.float32)
          * 0.02).astype(jnp.bfloat16)
    bp = jax.random.normal(k3, (HIDDEN,), jnp.float32) * 0.02
    wc = (jax.random.normal(k4, (N_CLASSES, HIDDEN), jnp.float32)   # torch (out,in)
          * 0.02).astype(jnp.bfloat16)
    bc = jax.random.normal(k5, (N_CLASSES,), jnp.float32) * 0.02

    # compact classifier weight: (8, 768), rows 0..5 real, 6..7 zero
    wc_t = jnp.zeros((N_CLASSES_SUB, HIDDEN), jnp.bfloat16).at[:N_CLASSES].set(wc)
    # fused biases: [pooler bias (768) | classifier bias zero-padded to 128]
    bias_cat = jnp.zeros((1, HIDDEN + N_CLASSES_PAD), jnp.float32)
    bias_cat = bias_cat.at[0, :HIDDEN].set(bp)
    bias_cat = bias_cat.at[0, HIDDEN:HIDDEN + N_CLASSES].set(bc)
    return emb_table, wp, bias_cat, wc_t


def reference_forward(input_ids, attention_mask, params):
    """Pure-JAX reference using the same stored weights in f32 math."""
    emb_table, wp, bias_cat, wc_t = params
    bp = bias_cat[:, :HIDDEN]
    bc = bias_cat[:, HIDDEN:HIDDEN + N_CLASSES]
    emb = jnp.take(emb_table.astype(jnp.float32), input_ids, axis=0)  # (B,S,H)
    mask = attention_mask.astype(jnp.float32)
    denom = jnp.maximum(jnp.sum(mask, axis=1, keepdims=True), 1.0)
    h = jnp.sum(emb * mask[:, :, None], axis=1) / denom
    pooled = jnp.tanh(h @ wp.astype(jnp.float32) + bp)
    logits = pooled @ wc_t[:N_CLASSES].astype(jnp.float32).T + bc
    return logits


if __name__ == "__main__":
    key = jax.random.PRNGKey(0)
    kp, kids = jax.random.split(key, 2)

    params = make_params(kp)
    input_ids = jax.random.randint(kids, (BATCH, SEQ), 0, VOCAB, jnp.int32)
    # attention mask: first tokens valid, tail padded (deterministic pattern)
    lengths = jnp.array([SEQ, SEQ - 3], jnp.int32)
    attention_mask = (jnp.arange(SEQ)[None, :] < lengths[:, None]).astype(
        jnp.int32)

    out = emo_labeller_forward(input_ids, attention_mask, params)
    out = jax.block_until_ready(out)

    ref = reference_forward(input_ids, attention_mask, params)
    assert out.shape == (BATCH, N_CLASSES)
    # bf16 activation rounding on the MXU inputs + approx reciprocal
    assert jnp.allclose(out, ref, atol=1e-3, rtol=1e-2), (
        jnp.max(jnp.abs(out - ref)))
    print("KERNEL_OK")
</pallas_src>

<mosaic_0001>
module attributes {stable_mosaic.version = 11 : i64} {
  func.func @emo_labeller_kernel(%arg0: i32, %arg1: memref<2x8x8xi32, #tpu.memory_space<vmem>>, %arg2: memref<128x768xbf16, #tpu.memory_space<vmem>>, %arg3: memref<768x768xbf16, #tpu.memory_space<vmem>>, %arg4: memref<1x896xf32, #tpu.memory_space<vmem>>, %arg5: memref<8x768xbf16, #tpu.memory_space<vmem>>, %arg6: memref<8x128xf32, #tpu.memory_space<vmem>>) attributes {dimension_semantics = [#tpu.dimension_semantics<parallel>], iteration_bounds = array<i64: 1>, scalar_prefetch = 0 : i64, scratch_operands = 0 : i64, tpu.core_type = #tpu.core_type<tc>, window_params = [{transform_indices = @transform_0, window_bounds = array<i64: 2, 8, 8>}, {pipeline_mode = #tpu.pipeline_mode<synchronous>, transform_indices = @transform_1, window_bounds = array<i64: 128, 768>}, {pipeline_mode = #tpu.pipeline_mode<synchronous>, transform_indices = @transform_2, window_bounds = array<i64: 768, 768>}, {pipeline_mode = #tpu.pipeline_mode<synchronous>, transform_indices = @transform_3, window_bounds = array<i64: 1, 896>}, {pipeline_mode = #tpu.pipeline_mode<synchronous>, transform_indices = @transform_4, window_bounds = array<i64: 8, 768>}, {transform_indices = @transform_5, window_bounds = array<i64: 8, 128>}]} {
    %c0 = arith.constant 0 : index
    %c0_0 = arith.constant 0 : index
    %c0_1 = arith.constant 0 : index
    %0 = vector.load %arg1[%c0, %c0_0, %c0_1] : memref<2x8x8xi32, #tpu.memory_space<vmem>>, vector<1x8x8xi32>
    %1 = vector.shape_cast %0 : vector<1x8x8xi32> to vector<8x8xi32>
    %c1 = arith.constant 1 : index
    %c0_2 = arith.constant 0 : index
    %c0_3 = arith.constant 0 : index
    %2 = vector.load %arg1[%c1, %c0_2, %c0_3] : memref<2x8x8xi32, #tpu.memory_space<vmem>>, vector<1x8x8xi32>
    %3 = vector.shape_cast %2 : vector<1x8x8xi32> to vector<8x8xi32>
    %4 = arith.sitofp %3 : vector<8x8xi32> to vector<8x8xf32>
    %5 = tpu.iota {dimensions = array<i32: 2>} : vector<8x8x128xi32>
    %6 = vector.shape_cast %1 : vector<8x8xi32> to vector<8x8x1xi32>
    %7 = vector.broadcast %6 : vector<8x8x1xi32> to vector<8x8x128xi32>
    %8 = arith.cmpi eq, %7, %5 : vector<8x8x128xi32>
    %9 = vector.shape_cast %4 : vector<8x8xf32> to vector<8x8x1xf32>
    %cst = arith.constant 0.000000e+00 : f32
    %10 = vector.shape_cast %9 : vector<8x8x1xf32> to vector<8x8x1xf32>
    %11 = vector.broadcast %10 : vector<8x8x1xf32> to vector<8x8x128xf32>
    %12 = vector.broadcast %cst : f32 to vector<8x8x128xf32>
    %13 = arith.select %8, %11, %12 : vector<8x8x128xi1>, vector<8x8x128xf32>
    %cst_4 = arith.constant dense<0.000000e+00> : vector<8x128xf32>
    %14 = vector.multi_reduction <add>, %13, %cst_4 [1] : vector<8x8x128xf32> to vector<8x128xf32>
    %cst_5 = arith.constant dense<0.000000e+00> : vector<8xf32>
    %15 = vector.multi_reduction <add>, %4, %cst_5 [1] : vector<8x8xf32> to vector<8xf32>
    %16 = vector.shape_cast %15 : vector<8xf32> to vector<8x1xf32>
    %cst_6 = arith.constant 1.000000e+00 : f32
    %17 = vector.broadcast %cst_6 : f32 to vector<8x1xf32>
    %18 = arith.maximumf %16, %17 : vector<8x1xf32>
    %19 = tpu.reciprocal %18 {approx = true} : vector<8x1xf32> -> vector<8x1xf32>
    %20 = vector.broadcast %19 : vector<8x1xf32> to vector<8x128xf32>
    %21 = arith.mulf %14, %20 : vector<8x128xf32>
    %22 = arith.truncf %21 : vector<8x128xf32> to vector<8x128xbf16>
    %c0_7 = arith.constant 0 : index
    %c0_8 = arith.constant 0 : index
    %23 = vector.load %arg2[%c0_7, %c0_8] : memref<128x768xbf16, #tpu.memory_space<vmem>>, vector<128x768xbf16>
    %cst_9 = arith.constant dense<0.000000e+00> : vector<8x768xf32>
    %24 = tpu.matmul %22, %23, %cst_9 {dimension_numbers = #tpu.dot_dimension_numbers<[1], [0], [0], [1], [0, 0, 1, 1], [], []>} : vector<8x128xbf16>, vector<128x768xbf16>, vector<8x768xf32> -> vector<8x768xf32>
    %c0_10 = arith.constant 0 : index
    %c0_11 = arith.constant 0 : index
    %25 = vector.load %arg4[%c0_10, %c0_11] : memref<1x896xf32, #tpu.memory_space<vmem>>, vector<1x768xf32>
    %c0_12 = arith.constant 0 : index
    %c768 = arith.constant 768 : index
    %26 = vector.load %arg4[%c0_12, %c768] : memref<1x896xf32, #tpu.memory_space<vmem>>, vector<1x128xf32>
    %27 = arith.truncf %24 : vector<8x768xf32> to vector<8x768xbf16>
    %c0_13 = arith.constant 0 : index
    %c0_14 = arith.constant 0 : index
    %28 = vector.load %arg3[%c0_13, %c0_14] : memref<768x768xbf16, #tpu.memory_space<vmem>>, vector<768x768xbf16>
    %cst_15 = arith.constant dense<0.000000e+00> : vector<8x768xf32>
    %29 = tpu.matmul %27, %28, %cst_15 {dimension_numbers = #tpu.dot_dimension_numbers<[1], [0], [0], [1], [0, 0, 1, 1], [], []>} : vector<8x768xbf16>, vector<768x768xbf16>, vector<8x768xf32> -> vector<8x768xf32>
    %30 = vector.broadcast %25 : vector<1x768xf32> to vector<8x768xf32>
    %31 = arith.addf %29, %30 : vector<8x768xf32>
    %32 = math.tanh %31 : vector<8x768xf32>
    %33 = arith.truncf %32 : vector<8x768xf32> to vector<8x768xbf16>
    %c0_16 = arith.constant 0 : index
    %c0_17 = arith.constant 0 : index
    %34 = vector.load %arg5[%c0_16, %c0_17] : memref<8x768xbf16, #tpu.memory_space<vmem>>, vector<8x768xbf16>
    %cst_18 = arith.constant dense<0.000000e+00> : vector<8x8xf32>
    %35 = tpu.matmul %33, %34, %cst_18 {dimension_numbers = #tpu.dot_dimension_numbers<[1], [1], [0], [0], [0, 0, 1, 0], [], []>} : vector<8x768xbf16>, vector<8x768xbf16>, vector<8x8xf32> -> vector<8x8xf32>
    %cst_19 = arith.constant 0.000000e+00 : f32
    %36 = vector.broadcast %cst_19 : f32 to vector<8x120xf32>
    %37 = tpu.concatenate %35, %36 in 1 : vector<8x8xf32>, vector<8x120xf32> -> vector<8x128xf32>
    %38 = vector.broadcast %26 : vector<1x128xf32> to vector<8x128xf32>
    %39 = arith.addf %37, %38 : vector<8x128xf32>
    %c0_20 = arith.constant 0 : index
    %c0_21 = arith.constant 0 : index
    %40 = vector.load %arg6[%c0_20, %c0_21] : memref<8x128xf32, #tpu.memory_space<vmem>>, vector<8x128xf32>
    tpu.vector_store %arg6[%c0_20, %c0_21], %39 {strides = array<i32>} : memref<8x128xf32, #tpu.memory_space<vmem>>, vector<8x128xf32>,
    return
  }
  func.func @transform_0(%arg0: i32) -> (i32, i32, i32) {
    %c0_i32 = arith.constant 0 : i32
    %c0_i32_0 = arith.constant 0 : i32
    %c0_i32_1 = arith.constant 0 : i32
    return %c0_i32, %arg0, %c0_i32_0 : i32, i32, i32
  }
  func.func @transform_1(%arg0: i32) -> (i32, i32) {
    %c0_i32 = arith.constant 0 : i32
    %c0_i32_0 = arith.constant 0 : i32
    %c0_i32_1 = arith.constant 0 : i32
    return %c0_i32, %c0_i32_0 : i32, i32
  }
  func.func @transform_2(%arg0: i32) -> (i32, i32) {
    %c0_i32 = arith.constant 0 : i32
    %c0_i32_0 = arith.constant 0 : i32
    %c0_i32_1 = arith.constant 0 : i32
    return %c0_i32, %c0_i32_0 : i32, i32
  }
  func.func @transform_3(%arg0: i32) -> (i32, i32) {
    %c0_i32 = arith.constant 0 : i32
    %c0_i32_0 = arith.constant 0 : i32
    %c0_i32_1 = arith.constant 0 : i32
    return %c0_i32, %c0_i32_0 : i32, i32
  }
  func.func @transform_4(%arg0: i32) -> (i32, i32) {
    %c0_i32 = arith.constant 0 : i32
    %c0_i32_0 = arith.constant 0 : i32
    %c0_i32_1 = arith.constant 0 : i32
    return %c0_i32, %c0_i32_0 : i32, i32
  }
  func.func @transform_5(%arg0: i32) -> (i32, i32) {
    %c0_i32 = arith.constant 0 : i32
    %c0_i32_0 = arith.constant 0 : i32
    return %arg0, %c0_i32 : i32, i32
  }
}

</mosaic_0001>

<llo_original>
// kernel: tpu_custom_call.1
$region0: #{tpu_custom_call.1}
  #allocation0 [shape = 'u32[]', space=smem, size = 0x4, offset = 0x4, fixed_abs, tag = 'smem constant byte address 0x4 - core index']
  #allocation1 [shape = 'u32[72,128]{1,0:T(1,128)}', space=vmem, size = 0x9000, scoped, tag = 'internal scratch']
  %s0 = inlined_call_operand.hbm [shape: s32[2,8,8], index: 0, kind: input, shape index: {}]
  %s1 = inlined_call_operand.hbm [shape: bf16[128,768], index: 1, kind: input, shape index: {}]
  %s2 = inlined_call_operand.hbm [shape: bf16[768,768], index: 2, kind: input, shape index: {}]
  %s3 = inlined_call_operand.hbm [shape: f32[1,896], index: 3, kind: input, shape index: {}]
  %s4 = inlined_call_operand.hbm [shape: bf16[8,768], index: 4, kind: input, shape index: {}]
  %s5 = inlined_call_operand.hbm [shape: f32[8,128], index: 5, kind: output, shape index: {}]
  %s6 = sld [smem:[#allocation0]]
  $region50: #{tpu_custom_call.1} parent=0
    _
  %s8 = ssub.s32 1, %s6
  %s9 = scalar_select 0, %s8, %s6
  $region1: #{tpu_custom_call.1} parent=0
    #allocation2 [shape = 'u8[8192]{0}', space=vmem, size = 0x2000, scoped, tag = 'input window, operand 0, single buffered']
    #allocation3 [shape = 's32[1]{0}', space=sflag, size = 0x4, scoped, tag = 'scoped memory for tpu_custom_call.1']
    #allocation4 [shape = 's32[1]{0}', space=sflag, size = 0x4, scoped, tag = 'scoped memory for tpu_custom_call.1']
    #allocation5 [shape = 'u8[196608]{0}', space=vmem, size = 0x30000, scoped, tag = 'input window, operand 1, single buffered']
    #allocation6 [shape = 's32[1]{0}', space=sflag, size = 0x4, scoped, tag = 'scoped memory for tpu_custom_call.1']
    #allocation7 [shape = 'u8[1179648]{0}', space=vmem, size = 0x120000, scoped, tag = 'input window, operand 2, single buffered']
    #allocation8 [shape = 'u8[3584]{0}', space=vmem, size = 0x1000, scoped, tag = 'input window, operand 3, single buffered']
    #allocation9 [shape = 's32[1]{0}', space=sflag, size = 0x4, scoped, tag = 'scoped memory for tpu_custom_call.1']
    #allocation10 [shape = 'u8[12288]{0}', space=vmem, size = 0x3000, scoped, tag = 'input window, operand 4, single buffered']
    #allocation11 [shape = 'u8[4096]{0}', space=vmem, size = 0x1000, scoped, tag = 'output window, operand 0, single buffered']
    %10 = vsyncpa [#allocation3], 0
    %11 = vsyncpa [#allocation6], 0
    %12 = vsyncpa [#allocation9], 0
    %13 = vsyncpa [#allocation4], 0
    // Predicated region
    $region2: #{tpu_custom_call.1} parent=1 // pred_check
      _
    $region3: #{tpu_custom_call.1} parent=1 // pred_check_branch
      %15 = sbr.rel (0) target = $region5
    $region4: #{tpu_custom_call.1} parent=1 // pred_region
      %17 = vsyncadd [#allocation3], 0
      %s18 = sshll.u32 %s0, 4
      %s19 = int_to_ptr.hbm [resolvable:$true] %s18
      %s20 = sshll.u32 [#allocation2], 4
      %s21 = int_to_ptr.vmem [resolvable:$true] %s20
      %26 = dma.hbm_to_vmem [thread:$0]  %s19, 256, %s21, [#allocation3], 128, 128, 8
    $region5: #{tpu_custom_call.1} parent=1 // pred_fallthru
      _
    // Predicated region
    $region6: #{tpu_custom_call.1} parent=1 // pred_check
      _
    $region7: #{tpu_custom_call.1} parent=1 // pred_check_branch
      %28 = sbr.rel (0) target = $region9
    $region8: #{tpu_custom_call.1} parent=1 // pred_region
      %30 = vsyncadd [#allocation6], 0
      %s31 = sshll.u32 %s1, 4
      %s32 = int_to_ptr.hbm [resolvable:$true] %s31
      %s33 = sshll.u32 [#allocation5], 4
      %s34 = int_to_ptr.vmem [resolvable:$true] %s33
      %39 = dma.hbm_to_vmem [thread:$0]  %s32, 6144, %s34, [#allocation6], 384, 384, 24
    $region9: #{tpu_custom_call.1} parent=1 // pred_fallthru
      _
    // Predicated region
    $region10: #{tpu_custom_call.1} parent=1 // pred_check
      _
    $region11: #{tpu_custom_call.1} parent=1 // pred_check_branch
      %41 = sbr.rel (0) target = $region13
    $region12: #{tpu_custom_call.1} parent=1 // pred_region
      %43 = vsyncadd [#allocation6], 0
      %s44 = sshll.u32 %s2, 4
      %s45 = int_to_ptr.hbm [resolvable:$true] %s44
      %s46 = sshll.u32 [#allocation7], 4
      %s47 = int_to_ptr.vmem [resolvable:$true] %s46
      %52 = dma.hbm_to_vmem [thread:$0]  %s45, 36864, %s47, [#allocation6], 384, 384, 24
    $region13: #{tpu_custom_call.1} parent=1 // pred_fallthru
      _
    // Predicated region
    $region14: #{tpu_custom_call.1} parent=1 // pred_check
      _
    $region15: #{tpu_custom_call.1} parent=1 // pred_check_branch
      %54 = sbr.rel (0) target = $region17
    $region16: #{tpu_custom_call.1} parent=1 // pred_region
      %56 = vsyncadd [#allocation9], 0
      %s58 = sshll.u32 %s3, 4
      %s59 = int_to_ptr.hbm [resolvable:$true] %s58
      %s60 = sshll.u32 [#allocation8], 4
      %s61 = int_to_ptr.vmem [resolvable:$true] %s60
      %63 = dma.hbm_to_vmem [thread:$0]  %s59, 112, %s61, [#allocation9]
    $region17: #{tpu_custom_call.1} parent=1 // pred_fallthru
      _
    // Predicated region
    $region18: #{tpu_custom_call.1} parent=1 // pred_check
      _
    $region19: #{tpu_custom_call.1} parent=1 // pred_check_branch
      %65 = sbr.rel (0) target = $region21
    $region20: #{tpu_custom_call.1} parent=1 // pred_region
      %67 = vsyncadd [#allocation9], 0
      %s69 = sshll.u32 %s4, 4
      %s70 = int_to_ptr.hbm [resolvable:$true] %s69
      %s71 = sshll.u32 [#allocation10], 4
      %s72 = int_to_ptr.vmem [resolvable:$true] %s71
      %74 = dma.hbm_to_vmem [thread:$0]  %s70, 384, %s72, [#allocation9]
    $region21: #{tpu_custom_call.1} parent=1 // pred_fallthru
      _
    // Predicated region
    $region22: #{tpu_custom_call.1} parent=1 // pred_check
      _
    $region23: #{tpu_custom_call.1} parent=1 // pred_check_branch
      %76 = sbr.rel (0) target = $region25
    $region24: #{tpu_custom_call.1} parent=1 // pred_region
      %78 = dma.done [#allocation3], 256
    $region25: #{tpu_custom_call.1} parent=1 // pred_fallthru
      _
    // Predicated region
    $region26: #{tpu_custom_call.1} parent=1 // pred_check
      _
    $region27: #{tpu_custom_call.1} parent=1 // pred_check_branch
      %80 = sbr.rel (0) target = $region29
    $region28: #{tpu_custom_call.1} parent=1 // pred_region
      %82 = dma.done [#allocation6], 6144
    $region29: #{tpu_custom_call.1} parent=1 // pred_fallthru
      _
    // Predicated region
    $region30: #{tpu_custom_call.1} parent=1 // pred_check
      _
    $region31: #{tpu_custom_call.1} parent=1 // pred_check_branch
      %84 = sbr.rel (0) target = $region33
    $region32: #{tpu_custom_call.1} parent=1 // pred_region
      %86 = dma.done [#allocation6], 36864
    $region33: #{tpu_custom_call.1} parent=1 // pred_fallthru
      _
    // Predicated region
    $region34: #{tpu_custom_call.1} parent=1 // pred_check
      _
    $region35: #{tpu_custom_call.1} parent=1 // pred_check_branch
      %88 = sbr.rel (0) target = $region37
    $region36: #{tpu_custom_call.1} parent=1 // pred_region
      %90 = dma.done [#allocation9], 112
    $region37: #{tpu_custom_call.1} parent=1 // pred_fallthru
      _
    // Predicated region
    $region38: #{tpu_custom_call.1} parent=1 // pred_check
      _
    $region39: #{tpu_custom_call.1} parent=1 // pred_check_branch
      %92 = sbr.rel (0) target = $region41
    $region40: #{tpu_custom_call.1} parent=1 // pred_region
      %94 = dma.done [#allocation9], 384
    $region41: #{tpu_custom_call.1} parent=1 // pred_fallthru
      _
    %v96 = vld [vmem:[#allocation2] sm:$0xff]
    %s97 = scalar_lea.vmem [#allocation2], 8
    %v98 = vld [vmem:[%s97] sm:$0xff]
    %v99 = vcvt.s32.f32 %v98
    %v100 = vlaneseq
    %v101 = vand.u32 %v100, 127
    %v102 = vperm.slane %v96, 0
    %v103 = vlaneseq
    %v104 = vshrl.u32 %v103, 7
    %106 = vset.pattern.permute.xlu0 %v104
    %107 = vperm.xlu0 %106, %v102
    %v108 = vpop.permute.xlu0 %107
    %v109 = vperm.slane %v96, 1
    %v110 = vlaneseq
    %v111 = vshrl.u32 %v110, 7
    %113 = vset.pattern.permute.xlu0 %v111
    %114 = vperm.xlu0 %113, %v109
    %v115 = vpop.permute.xlu0 %114
    %v116 = vperm.slane %v96, 2
    %v117 = vlaneseq
    %v118 = vshrl.u32 %v117, 7
    %120 = vset.pattern.permute.xlu0 %v118
    %121 = vperm.xlu0 %120, %v116
    %v122 = vpop.permute.xlu0 %121
    %v123 = vperm.slane %v96, 3
    %v124 = vlaneseq
    %v125 = vshrl.u32 %v124, 7
    %127 = vset.pattern.permute.xlu0 %v125
    %128 = vperm.xlu0 %127, %v123
    %v129 = vpop.permute.xlu0 %128
    %v130 = vperm.slane %v96, 4
    %v131 = vlaneseq
    %v132 = vshrl.u32 %v131, 7
    %134 = vset.pattern.permute.xlu0 %v132
    %135 = vperm.xlu0 %134, %v130
    %v136 = vpop.permute.xlu0 %135
    %v137 = vperm.slane %v96, 5
    %v138 = vlaneseq
    %v139 = vshrl.u32 %v138, 7
    %141 = vset.pattern.permute.xlu0 %v139
    %142 = vperm.xlu0 %141, %v137
    %v143 = vpop.permute.xlu0 %142
    %v144 = vperm.slane %v96, 6
    %v145 = vlaneseq
    %v146 = vshrl.u32 %v145, 7
    %148 = vset.pattern.permute.xlu0 %v146
    %149 = vperm.xlu0 %148, %v144
    %v150 = vpop.permute.xlu0 %149
    %v151 = vperm.slane %v96, 7
    %v152 = vlaneseq
    %v153 = vshrl.u32 %v152, 7
    %155 = vset.pattern.permute.xlu0 %v153
    %156 = vperm.xlu0 %155, %v151
    %v157 = vpop.permute.xlu0 %156
    %vm158 = vcmp.eq.s32.totalorder %v108, %v101
    %vm159 = vcmp.eq.s32.totalorder %v115, %v101
    %vm160 = vcmp.eq.s32.totalorder %v122, %v101
    %vm161 = vcmp.eq.s32.totalorder %v129, %v101
    %vm162 = vcmp.eq.s32.totalorder %v136, %v101
    %vm163 = vcmp.eq.s32.totalorder %v143, %v101
    %vm164 = vcmp.eq.s32.totalorder %v150, %v101
    %vm165 = vcmp.eq.s32.totalorder %v157, %v101
    %v166 = vperm.slane %v99, 0
    %v167 = vlaneseq
    %v168 = vshrl.u32 %v167, 7
    %170 = vset.pattern.permute.xlu0 %v168
    %171 = vperm.xlu0 %170, %v166
    %v172 = vpop.permute.xlu0 %171
    %v173 = vperm.slane %v99, 1
    %v174 = vlaneseq
    %v175 = vshrl.u32 %v174, 7
    %177 = vset.pattern.permute.xlu0 %v175
    %178 = vperm.xlu0 %177, %v173
    %v179 = vpop.permute.xlu0 %178
    %v180 = vperm.slane %v99, 2
    %v181 = vlaneseq
    %v182 = vshrl.u32 %v181, 7
    %184 = vset.pattern.permute.xlu0 %v182
    %185 = vperm.xlu0 %184, %v180
    %v186 = vpop.permute.xlu0 %185
    %v187 = vperm.slane %v99, 3
    %v188 = vlaneseq
    %v189 = vshrl.u32 %v188, 7
    %191 = vset.pattern.permute.xlu0 %v189
    %192 = vperm.xlu0 %191, %v187
    %v193 = vpop.permute.xlu0 %192
    %v194 = vperm.slane %v99, 4
    %v195 = vlaneseq
    %v196 = vshrl.u32 %v195, 7
    %198 = vset.pattern.permute.xlu0 %v196
    %199 = vperm.xlu0 %198, %v194
    %v200 = vpop.permute.xlu0 %199
    %v201 = vperm.slane %v99, 5
    %v202 = vlaneseq
    %v203 = vshrl.u32 %v202, 7
    %205 = vset.pattern.permute.xlu0 %v203
    %206 = vperm.xlu0 %205, %v201
    %v207 = vpop.permute.xlu0 %206
    %v208 = vperm.slane %v99, 6
    %v209 = vlaneseq
    %v210 = vshrl.u32 %v209, 7
    %212 = vset.pattern.permute.xlu0 %v210
    %213 = vperm.xlu0 %212, %v208
    %v214 = vpop.permute.xlu0 %213
    %v215 = vperm.slane %v99, 7
    %v216 = vlaneseq
    %v217 = vshrl.u32 %v216, 7
    %219 = vset.pattern.permute.xlu0 %v217
    %220 = vperm.xlu0 %219, %v215
    %v221 = vpop.permute.xlu0 %220
    %v222 = vsel %vm158, %v172, 0.0
    %v223 = vsel %vm159, %v179, 0.0
    %v224 = vsel %vm160, %v186, 0.0
    %v225 = vsel %vm161, %v193, 0.0
    %v226 = vsel %vm162, %v200, 0.0
    %v227 = vsel %vm163, %v207, 0.0
    %v228 = vsel %vm164, %v214, 0.0
    %v229 = vsel %vm165, %v221, 0.0
    %v230 = vrot.slane %v222, 4
    %v231 = vadd.f32 %v222, %v230
    %v232 = vrot.slane %v231, 2
    %v233 = vadd.f32 %v231, %v232
    %v234 = vrot.slane %v233, 1
    %v235 = vadd.f32 %v233, %v234
    %v236 = vrot.slane %v223, 4
    %v237 = vadd.f32 %v223, %v236
    %v238 = vrot.slane %v237, 2
    %v239 = vadd.f32 %v237, %v238
    %v240 = vrot.slane %v239, 1
    %v241 = vadd.f32 %v239, %v240
    %v242 = vrot.slane %v224, 4
    %v243 = vadd.f32 %v224, %v242
    %v244 = vrot.slane %v243, 2
    %v245 = vadd.f32 %v243, %v244
    %v246 = vrot.slane %v245, 1
    %v247 = vadd.f32 %v245, %v246
    %v248 = vrot.slane %v225, 4
    %v249 = vadd.f32 %v225, %v248
    %v250 = vrot.slane %v249, 2
    %v251 = vadd.f32 %v249, %v250
    %v252 = vrot.slane %v251, 1
    %v253 = vadd.f32 %v251, %v252
    %v254 = vrot.slane %v226, 4
    %v255 = vadd.f32 %v226, %v254
    %v256 = vrot.slane %v255, 2
    %v257 = vadd.f32 %v255, %v256
    %v258 = vrot.slane %v257, 1
    %v259 = vadd.f32 %v257, %v258
    %v260 = vrot.slane %v227, 4
    %v261 = vadd.f32 %v227, %v260
    %v262 = vrot.slane %v261, 2
    %v263 = vadd.f32 %v261, %v262
    %v264 = vrot.slane %v263, 1
    %v265 = vadd.f32 %v263, %v264
    %v266 = vrot.slane %v228, 4
    %v267 = vadd.f32 %v228, %v266
    %v268 = vrot.slane %v267, 2
    %v269 = vadd.f32 %v267, %v268
    %v270 = vrot.slane %v269, 1
    %v271 = vadd.f32 %v269, %v270
    %v272 = vrot.slane %v229, 4
    %v273 = vadd.f32 %v229, %v272
    %v274 = vrot.slane %v273, 2
    %v275 = vadd.f32 %v273, %v274
    %v276 = vrot.slane %v275, 1
    %v277 = vadd.f32 %v275, %v276
    %vm278 = vcmask 64512
    %v279 = vsel %vm278, %v99, 0.0
    %280 = vadd.xlane.f32.xlu0 %v279
    %v281 = vpop.xlane.xlu0 %280
    %v282 = vmax.f32 %v281, 1.0
    %v283 = vrcp.pop %v282
    %v285 = vrot.slane %v283, 1
    %v286 = vrot.slane %v283, 2
    %v287 = vrot.slane %v283, 3
    %v288 = vrot.slane %v283, 4
    %v289 = vrot.slane %v283, 5
    %v290 = vrot.slane %v283, 6
    %v291 = vrot.slane %v283, 7
    %v300 = vmul.f32 %v235, %v283
    %v301 = vmul.f32 %v241, %v285
    %v302 = vmul.f32 %v247, %v286
    %v303 = vmul.f32 %v253, %v287
    %v304 = vmul.f32 %v259, %v288
    %v305 = vmul.f32 %v265, %v289
    %v306 = vmul.f32 %v271, %v290
    %v307 = vmul.f32 %v277, %v291
    %v308 = vpack.c.bf16 %v300, %v300
    %v309 = vpack.c.bf16 %v301, %v301
    %v310 = vpack.c.bf16 %v302, %v302
    %v311 = vpack.c.bf16 %v303, %v303
    %v312 = vpack.c.bf16 %v304, %v304
    %v313 = vpack.c.bf16 %v305, %v305
    %v314 = vpack.c.bf16 %v306, %v306
    %v315 = vpack.c.bf16 %v307, %v307
    %v316 = vld [vmem:[#allocation5] sm:$0xff]
    %v317 = vld [vmem:[#allocation5 + $0x8] sm:$0xff]
    %v318 = vld [vmem:[#allocation5 + $0x10] sm:$0xff]
    %v319 = vld [vmem:[#allocation5 + $0x18] sm:$0xff]
    %v320 = vld [vmem:[#allocation5 + $0x20] sm:$0xff]
    %v321 = vld [vmem:[#allocation5 + $0x28] sm:$0xff]
    %v322 = vld [vmem:[#allocation5 + $0x30] sm:$0xff]
    %v323 = vld [vmem:[#allocation5 + $0x38] sm:$0xff]
    %v324 = vld [vmem:[#allocation5 + $0x40] sm:$0xff]
    %v325 = vld [vmem:[#allocation5 + $0x48] sm:$0xff]
    %v326 = vld [vmem:[#allocation5 + $0x50] sm:$0xff]
    %v327 = vld [vmem:[#allocation5 + $0x58] sm:$0xff]
    %v328 = vld [vmem:[#allocation5 + $0x60] sm:$0xff]
    %v329 = vld [vmem:[#allocation5 + $0x68] sm:$0xff]
    %v330 = vld [vmem:[#allocation5 + $0x70] sm:$0xff]
    %v331 = vld [vmem:[#allocation5 + $0x78] sm:$0xff]
    %v332 = vld [vmem:[#allocation5 + $0x80] sm:$0xff]
    %v333 = vld [vmem:[#allocation5 + $0x88] sm:$0xff]
    %v334 = vld [vmem:[#allocation5 + $0x90] sm:$0xff]
    %v335 = vld [vmem:[#allocation5 + $0x98] sm:$0xff]
    %v336 = vld [vmem:[#allocation5 + $0xa0] sm:$0xff]
    %v337 = vld [vmem:[#allocation5 + $0xa8] sm:$0xff]
    %v338 = vld [vmem:[#allocation5 + $0xb0] sm:$0xff]
    %v339 = vld [vmem:[#allocation5 + $0xb8] sm:$0xff]
    %v340 = vld [vmem:[#allocation5 + $0xc0] sm:$0xff]
    %v341 = vld [vmem:[#allocation5 + $0xc8] sm:$0xff]
    %v342 = vld [vmem:[#allocation5 + $0xd0] sm:$0xff]
    %v343 = vld [vmem:[#allocation5 + $0xd8] sm:$0xff]
    %v344 = vld [vmem:[#allocation5 + $0xe0] sm:$0xff]
    %v345 = vld [vmem:[#allocation5 + $0xe8] sm:$0xff]
    %v346 = vld [vmem:[#allocation5 + $0xf0] sm:$0xff]
    %v347 = vld [vmem:[#allocation5 + $0xf8] sm:$0xff]
    %v348 = vld [vmem:[#allocation5 + $0x100] sm:$0xff]
    %v349 = vld [vmem:[#allocation5 + $0x108] sm:$0xff]
    %v350 = vld [vmem:[#allocation5 + $0x110] sm:$0xff]
    %v351 = vld [vmem:[#allocation5 + $0x118] sm:$0xff]
    %v352 = vld [vmem:[#allocation5 + $0x120] sm:$0xff]
    %v353 = vld [vmem:[#allocation5 + $0x128] sm:$0xff]
    %v354 = vld [vmem:[#allocation5 + $0x130] sm:$0xff]
    %v355 = vld [vmem:[#allocation5 + $0x138] sm:$0xff]
    %v356 = vld [vmem:[#allocation5 + $0x140] sm:$0xff]
    %v357 = vld [vmem:[#allocation5 + $0x148] sm:$0xff]
    %v358 = vld [vmem:[#allocation5 + $0x150] sm:$0xff]
    %v359 = vld [vmem:[#allocation5 + $0x158] sm:$0xff]
    %v360 = vld [vmem:[#allocation5 + $0x160] sm:$0xff]
    %v361 = vld [vmem:[#allocation5 + $0x168] sm:$0xff]
    %v362 = vld [vmem:[#allocation5 + $0x170] sm:$0xff]
    %v363 = vld [vmem:[#allocation5 + $0x178] sm:$0xff]
    %v372 = vunpack.c.l.b16 %v308
    %v373 = vunpack.c.l.b16 %v309
    %v374 = vunpack.c.l.b16 %v310
    %v375 = vunpack.c.l.b16 %v311
    %v376 = vunpack.c.l.b16 %v312
    %v377 = vunpack.c.l.b16 %v313
    %v378 = vunpack.c.l.b16 %v314
    %v379 = vunpack.c.l.b16 %v315
    %v380 = vrot.slane %v373, 7
    %vm381 = vcmask 1041409
    %v382 = vsel %vm381, %v380, %v372
    %v383 = vrot.slane %v374, 6
    %vm384 = vcmask 1042434
    %v385 = vsel %vm384, %v383, %v382
    %v386 = vrot.slane %v375, 5
    %vm387 = vcmask 1043459
    %v388 = vsel %vm387, %v386, %v385
    %v389 = vrot.slane %v376, 4
    %vm390 = vcmask 1044484
    %v391 = vsel %vm390, %v389, %v388
    %v392 = vrot.slane %v377, 3
    %vm393 = vcmask 1045509
    %v394 = vsel %vm393, %v392, %v391
    %v395 = vrot.slane %v378, 2
    %vm396 = vcmask 1046534
    %v397 = vsel %vm396, %v395, %v394
    %v398 = vrot.slane %v379, 1
    %vm399 = vcmask 1047559
    %v400 = vsel %vm399, %v398, %v397
    %v401 = vpack.c.b16 %v400, %v400
    %v451 = vunpack.c.l.b16 %v316
    %v452 = vunpack.c.h.b16 %v316
    %v453 = vunpack.c.l.b16 %v317
    %v454 = vunpack.c.h.b16 %v317
    %v455 = vunpack.c.l.b16 %v318
    %v456 = vunpack.c.h.b16 %v318
    %v457 = vunpack.c.l.b16 %v319
    %v458 = vunpack.c.h.b16 %v319
    %v459 = vunpack.c.l.b16 %v320
    %v460 = vunpack.c.h.b16 %v320
    %v461 = vunpack.c.l.b16 %v321
    %v462 = vunpack.c.h.b16 %v321
    %v463 = vunpack.c.l.b16 %v322
    %v464 = vunpack.c.h.b16 %v322
    %v465 = vunpack.c.l.b16 %v323
    %v466 = vunpack.c.h.b16 %v323
    %v467 = vunpack.c.l.b16 %v324
    %v468 = vunpack.c.h.b16 %v324
    %v469 = vunpack.c.l.b16 %v325
    %v470 = vunpack.c.h.b16 %v325
    %v471 = vunpack.c.l.b16 %v326
    %v472 = vunpack.c.h.b16 %v326
    %v473 = vunpack.c.l.b16 %v327
    %v474 = vunpack.c.h.b16 %v327
    %v475 = vunpack.c.l.b16 %v328
    %v476 = vunpack.c.h.b16 %v328
    %v477 = vunpack.c.l.b16 %v329
    %v478 = vunpack.c.h.b16 %v329
    %v479 = vunpack.c.l.b16 %v330
    %v480 = vunpack.c.h.b16 %v330
    %v481 = vunpack.c.l.b16 %v331
    %v482 = vunpack.c.h.b16 %v331
    %v483 = vunpack.c.l.b16 %v332
    %v484 = vunpack.c.h.b16 %v332
    %v485 = vunpack.c.l.b16 %v333
    %v486 = vunpack.c.h.b16 %v333
    %v487 = vunpack.c.l.b16 %v334
    %v488 = vunpack.c.h.b16 %v334
    %v489 = vunpack.c.l.b16 %v335
    %v490 = vunpack.c.h.b16 %v335
    %v491 = vunpack.c.l.b16 %v336
    %v492 = vunpack.c.h.b16 %v336
    %v493 = vunpack.c.l.b16 %v337
    %v494 = vunpack.c.h.b16 %v337
    %v495 = vunpack.c.l.b16 %v338
    %v496 = vunpack.c.h.b16 %v338
    %v497 = vunpack.c.l.b16 %v339
    %v498 = vunpack.c.h.b16 %v339
    %v499 = vunpack.c.l.b16 %v340
    %v500 = vunpack.c.h.b16 %v340
    %v501 = vunpack.c.l.b16 %v341
    %v502 = vunpack.c.h.b16 %v341
    %v503 = vunpack.c.l.b16 %v342
    %v504 = vunpack.c.h.b16 %v342
    %v505 = vunpack.c.l.b16 %v343
    %v506 = vunpack.c.h.b16 %v343
    %v507 = vunpack.c.l.b16 %v344
    %v508 = vunpack.c.h.b16 %v344
    %v509 = vunpack.c.l.b16 %v345
    %v510 = vunpack.c.h.b16 %v345
    %v511 = vunpack.c.l.b16 %v346
    %v512 = vunpack.c.h.b16 %v346
    %v513 = vunpack.c.l.b16 %v347
    %v514 = vunpack.c.h.b16 %v347
    %v515 = vunpack.c.l.b16 %v348
    %v516 = vunpack.c.h.b16 %v348
    %v517 = vunpack.c.l.b16 %v349
    %v518 = vunpack.c.h.b16 %v349
    %v519 = vunpack.c.l.b16 %v350
    %v520 = vunpack.c.h.b16 %v350
    %v521 = vunpack.c.l.b16 %v351
    %v522 = vunpack.c.h.b16 %v351
    %v523 = vunpack.c.l.b16 %v352
    %v524 = vunpack.c.h.b16 %v352
    %v525 = vunpack.c.l.b16 %v353
    %v526 = vunpack.c.h.b16 %v353
    %v527 = vunpack.c.l.b16 %v354
    %v528 = vunpack.c.h.b16 %v354
    %v529 = vunpack.c.l.b16 %v355
    %v530 = vunpack.c.h.b16 %v355
    %v531 = vunpack.c.l.b16 %v356
    %v532 = vunpack.c.h.b16 %v356
    %v533 = vunpack.c.l.b16 %v357
    %v534 = vunpack.c.h.b16 %v357
    %v535 = vunpack.c.l.b16 %v358
    %v536 = vunpack.c.h.b16 %v358
    %v537 = vunpack.c.l.b16 %v359
    %v538 = vunpack.c.h.b16 %v359
    %v539 = vunpack.c.l.b16 %v360
    %v540 = vunpack.c.h.b16 %v360
    %v541 = vunpack.c.l.b16 %v361
    %v542 = vunpack.c.h.b16 %v361
    %v543 = vunpack.c.l.b16 %v362
    %v544 = vunpack.c.h.b16 %v362
    %v545 = vunpack.c.l.b16 %v363
    %v546 = vunpack.c.h.b16 %v363
    %v547 = vpack.c.b16 %v457, %v451
    %v548 = vpack.c.b16 %v458, %v452
    %v549 = vpack.c.b16 %v459, %v453
    %v550 = vpack.c.b16 %v460, %v454
    %v551 = vpack.c.b16 %v461, %v455
    %v552 = vpack.c.b16 %v462, %v456
    %v553 = vpack.c.b16 %v469, %v463
    %v554 = vpack.c.b16 %v470, %v464
    %v555 = vpack.c.b16 %v471, %v465
    %v556 = vpack.c.b16 %v472, %v466
    %v557 = vpack.c.b16 %v473, %v467
    %v558 = vpack.c.b16 %v474, %v468
    %v559 = vpack.c.b16 %v481, %v475
    %v560 = vpack.c.b16 %v482, %v476
    %v561 = vpack.c.b16 %v483, %v477
    %v562 = vpack.c.b16 %v484, %v478
    %v563 = vpack.c.b16 %v485, %v479
    %v564 = vpack.c.b16 %v486, %v480
    %v565 = vpack.c.b16 %v493, %v487
    %v566 = vpack.c.b16 %v494, %v488
    %v567 = vpack.c.b16 %v495, %v489
    %v568 = vpack.c.b16 %v496, %v490
    %v569 = vpack.c.b16 %v497, %v491
    %v570 = vpack.c.b16 %v498, %v492
    %v571 = vpack.c.b16 %v505, %v499
    %v572 = vpack.c.b16 %v506, %v500
    %v573 = vpack.c.b16 %v507, %v501
    %v574 = vpack.c.b16 %v508, %v502
    %v575 = vpack.c.b16 %v509, %v503
    %v576 = vpack.c.b16 %v510, %v504
    %v577 = vpack.c.b16 %v517, %v511
    %v578 = vpack.c.b16 %v518, %v512
    %v579 = vpack.c.b16 %v519, %v513
    %v580 = vpack.c.b16 %v520, %v514
    %v581 = vpack.c.b16 %v521, %v515
    %v582 = vpack.c.b16 %v522, %v516
    %v583 = vpack.c.b16 %v529, %v523
    %v584 = vpack.c.b16 %v530, %v524
    %v585 = vpack.c.b16 %v531, %v525
    %v586 = vpack.c.b16 %v532, %v526
    %v587 = vpack.c.b16 %v533, %v527
    %v588 = vpack.c.b16 %v534, %v528
    %v589 = vpack.c.b16 %v541, %v535
    %v590 = vpack.c.b16 %v542, %v536
    %v591 = vpack.c.b16 %v543, %v537
    %v592 = vpack.c.b16 %v544, %v538
    %v593 = vpack.c.b16 %v545, %v539
    %v594 = vpack.c.b16 %v546, %v540
    %643 = vmatpush.bf16.msra.mxu0 %v589
    %644 = vmatpush.bf16.msra.mxu0 %v583
    %645 = vmatpush.bf16.msra.mxu0 %v577
    %646 = vmatpush.bf16.msra.mxu0 %v571
    %647 = vmatpush.bf16.msra.mxu0 %v565
    %648 = vmatpush.bf16.msra.mxu0 %v559
    %649 = vmatpush.bf16.msra.mxu0 %v553
    %650 = vmatpush.bf16.msra.mxu0 %v547
    %651 = vmatmul.bf16.gmra.mxu0 %v401
    %v652 = vpop.f32.mrf.mxu0
    %v653 = vadd.f32 0.0, %v652
    %v654 = vpop.f32.mrf.mxu0
    %655 = vdwg.mxu0
    %656 = vmatpush.bf16.msra.mxu0 %v590
    %657 = vmatpush.bf16.msra.mxu0 %v584
    %658 = vmatpush.bf16.msra.mxu0 %v578
    %659 = vmatpush.bf16.msra.mxu0 %v572
    %660 = vmatpush.bf16.msra.mxu0 %v566
    %661 = vmatpush.bf16.msra.mxu0 %v560
    %662 = vmatpush.bf16.msra.mxu0 %v554
    %663 = vmatpush.bf16.msra.mxu0 %v548
    %664 = vmatmul.bf16.gmra.mxu0 %v401
    %v665 = vpop.f32.mrf.mxu0
    %v666 = vadd.f32 0.0, %v665
    %v667 = vpop.f32.mrf.mxu0
    %668 = vdwg.mxu0
    %669 = vmatpush.bf16.msra.mxu0 %v591
    %670 = vmatpush.bf16.msra.mxu0 %v585
    %671 = vmatpush.bf16.msra.mxu0 %v579
    %672 = vmatpush.bf16.msra.mxu0 %v573
    %673 = vmatpush.bf16.msra.mxu0 %v567
    %674 = vmatpush.bf16.msra.mxu0 %v561
    %675 = vmatpush.bf16.msra.mxu0 %v555
    %676 = vmatpush.bf16.msra.mxu0 %v549
    %677 = vmatmul.bf16.gmra.mxu0 %v401
    %v678 = vpop.f32.mrf.mxu0
    %v679 = vadd.f32 0.0, %v678
    %v680 = vpop.f32.mrf.mxu0
    %681 = vdwg.mxu0
    %682 = vmatpush.bf16.msra.mxu0 %v592
    %683 = vmatpush.bf16.msra.mxu0 %v586
    %684 = vmatpush.bf16.msra.mxu0 %v580
    %685 = vmatpush.bf16.msra.mxu0 %v574
    %686 = vmatpush.bf16.msra.mxu0 %v568
    %687 = vmatpush.bf16.msra.mxu0 %v562
    %688 = vmatpush.bf16.msra.mxu0 %v556
    %689 = vmatpush.bf16.msra.mxu0 %v550
    %690 = vmatmul.bf16.gmra.mxu0 %v401
    %v691 = vpop.f32.mrf.mxu0
    %v692 = vadd.f32 0.0, %v691
    %v693 = vpop.f32.mrf.mxu0
    %694 = vdwg.mxu0
    %695 = vmatpush.bf16.msra.mxu0 %v593
    %696 = vmatpush.bf16.msra.mxu0 %v587
    %697 = vmatpush.bf16.msra.mxu0 %v581
    %698 = vmatpush.bf16.msra.mxu0 %v575
    %699 = vmatpush.bf16.msra.mxu0 %v569
    %700 = vmatpush.bf16.msra.mxu0 %v563
    %701 = vmatpush.bf16.msra.mxu0 %v557
    %702 = vmatpush.bf16.msra.mxu0 %v551
    %703 = vmatmul.bf16.gmra.mxu0 %v401
    %v704 = vpop.f32.mrf.mxu0
    %v705 = vadd.f32 0.0, %v704
    %v706 = vpop.f32.mrf.mxu0
    %707 = vdwg.mxu0
    %708 = vmatpush.bf16.msra.mxu0 %v594
    %709 = vmatpush.bf16.msra.mxu0 %v588
    %710 = vmatpush.bf16.msra.mxu0 %v582
    %711 = vmatpush.bf16.msra.mxu0 %v576
    %712 = vmatpush.bf16.msra.mxu0 %v570
    %713 = vmatpush.bf16.msra.mxu0 %v564
    %714 = vmatpush.bf16.msra.mxu0 %v558
    %715 = vmatpush.bf16.msra.mxu0 %v552
    %716 = vmatmul.bf16.gmra.mxu0 %v401
    %v717 = vpop.f32.mrf.mxu0
    %v718 = vadd.f32 0.0, %v717
    %v719 = vpop.f32.mrf.mxu0
    %720 = vdwg.mxu0
    %v721 = vld [vmem:[#allocation8] sm:$0x3f]
    %v722 = vld [vmem:[#allocation8 + $0x6] sm:$0x1]
    %v723 = vpack.c.bf16 %v653, %v653
    %v724 = vpack.c.bf16 %v666, %v666
    %v725 = vpack.c.bf16 %v679, %v679
    %v726 = vpack.c.bf16 %v692, %v692
    %v727 = vpack.c.bf16 %v705, %v705
    %v728 = vpack.c.bf16 %v718, %v718
    %v729 = vld [vmem:[#allocation7] sm:$0xff]
    %v730 = vld [vmem:[#allocation7 + $0x8] sm:$0xff]
    %v731 = vld [vmem:[#allocation7 + $0x10] sm:$0xff]
    %v732 = vld [vmem:[#allocation7 + $0x18] sm:$0xff]
    %v733 = vld [vmem:[#allocation7 + $0x20] sm:$0xff]
    %v734 = vld [vmem:[#allocation7 + $0x28] sm:$0xff]
    %v735 = vld [vmem:[#allocation7 + $0x30] sm:$0xff]
    %v736 = vld [vmem:[#allocation7 + $0x38] sm:$0xff]
    %v737 = vld [vmem:[#allocation7 + $0x40] sm:$0xff]
    %v738 = vld [vmem:[#allocation7 + $0x48] sm:$0xff]
    %v739 = vld [vmem:[#allocation7 + $0x50] sm:$0xff]
    %v740 = vld [vmem:[#allocation7 + $0x58] sm:$0xff]
    %v741 = vld [vmem:[#allocation7 + $0x60] sm:$0xff]
    %v742 = vld [vmem:[#allocation7 + $0x68] sm:$0xff]
    %v743 = vld [vmem:[#allocation7 + $0x70] sm:$0xff]
    %v744 = vld [vmem:[#allocation7 + $0x78] sm:$0xff]
    %v745 = vld [vmem:[#allocation7 + $0x80] sm:$0xff]
    %v746 = vld [vmem:[#allocation7 + $0x88] sm:$0xff]
    %v747 = vld [vmem:[#allocation7 + $0x90] sm:$0xff]
    %v748 = vld [vmem:[#allocation7 + $0x98] sm:$0xff]
    %v749 = vld [vmem:[#allocation7 + $0xa0] sm:$0xff]
    %v750 = vld [vmem:[#allocation7 + $0xa8] sm:$0xff]
    %v751 = vld [vmem:[#allocation7 + $0xb0] sm:$0xff]
    %v752 = vld [vmem:[#allocation7 + $0xb8] sm:$0xff]
    %v753 = vld [vmem:[#allocation7 + $0xc0] sm:$0xff]
    %v754 = vld [vmem:[#allocation7 + $0xc8] sm:$0xff]
    %v755 = vld [vmem:[#allocation7 + $0xd0] sm:$0xff]
    %v756 = vld [vmem:[#allocation7 + $0xd8] sm:$0xff]
    %v757 = vld [vmem:[#allocation7 + $0xe0] sm:$0xff]
    %v758 = vld [vmem:[#allocation7 + $0xe8] sm:$0xff]
    %v759 = vld [vmem:[#allocation7 + $0xf0] sm:$0xff]
    %v760 = vld [vmem:[#allocation7 + $0xf8] sm:$0xff]
    %v761 = vld [vmem:[#allocation7 + $0x100] sm:$0xff]
    %v762 = vld [vmem:[#allocation7 + $0x108] sm:$0xff]
    %v763 = vld [vmem:[#allocation7 + $0x110] sm:$0xff]
    %v764 = vld [vmem:[#allocation7 + $0x118] sm:$0xff]
    %v765 = vld [vmem:[#allocation7 + $0x120] sm:$0xff]
    %v766 = vld [vmem:[#allocation7 + $0x128] sm:$0xff]
    %v767 = vld [vmem:[#allocation7 + $0x130] sm:$0xff]
    %v768 = vld [vmem:[#allocation7 + $0x138] sm:$0xff]
    %v769 = vld [vmem:[#allocation7 + $0x140] sm:$0xff]
    %v770 = vld [vmem:[#allocation7 + $0x148] sm:$0xff]
    %v771 = vld [vmem:[#allocation7 + $0x150] sm:$0xff]
    %v772 = vld [vmem:[#allocation7 + $0x158] sm:$0xff]
    %v773 = vld [vmem:[#allocation7 + $0x160] sm:$0xff]
    %v774 = vld [vmem:[#allocation7 + $0x168] sm:$0xff]
    %v775 = vld [vmem:[#allocation7 + $0x170] sm:$0xff]
    %v776 = vld [vmem:[#allocation7 + $0x178] sm:$0xff]
    %v777 = vld [vmem:[#allocation7 + $0x180] sm:$0xff]
    %v778 = vld [vmem:[#allocation7 + $0x188] sm:$0xff]
    %v779 = vld [vmem:[#allocation7 + $0x190] sm:$0xff]
    %v780 = vld [vmem:[#allocation7 + $0x198] sm:$0xff]
    %v781 = vld [vmem:[#allocation7 + $0x1a0] sm:$0xff]
    %v782 = vld [vmem:[#allocation7 + $0x1a8] sm:$0xff]
    %v783 = vld [vmem:[#allocation7 + $0x1b0] sm:$0xff]
    %v784 = vld [vmem:[#allocation7 + $0x1b8] sm:$0xff]
    %v785 = vld [vmem:[#allocation7 + $0x1c0] sm:$0xff]
    %v786 = vld [vmem:[#allocation7 + $0x1c8] sm:$0xff]
    %v787 = vld [vmem:[#allocation7 + $0x1d0] sm:$0xff]
    %v788 = vld [vmem:[#allocation7 + $0x1d8] sm:$0xff]
    %v789 = vld [vmem:[#allocation7 + $0x1e0] sm:$0xff]
    %v790 = vld [vmem:[#allocation7 + $0x1e8] sm:$0xff]
    %v791 = vld [vmem:[#allocation7 + $0x1f0] sm:$0xff]
    %v792 = vld [vmem:[#allocation7 + $0x1f8] sm:$0xff]
    %v793 = vld [vmem:[#allocation7 + $0x200] sm:$0xff]
    %v794 = vld [vmem:[#allocation7 + $0x208] sm:$0xff]
    %v795 = vld [vmem:[#allocation7 + $0x210] sm:$0xff]
    %v796 = vld [vmem:[#allocation7 + $0x218] sm:$0xff]
    %v797 = vld [vmem:[#allocation7 + $0x220] sm:$0xff]
    %v798 = vld [vmem:[#allocation7 + $0x228] sm:$0xff]
    %v799 = vld [vmem:[#allocation7 + $0x230] sm:$0xff]
    %v800 = vld [vmem:[#allocation7 + $0x238] sm:$0xff]
    %v801 = vld [vmem:[#allocation7 + $0x240] sm:$0xff]
    %v802 = vld [vmem:[#allocation7 + $0x248] sm:$0xff]
    %v803 = vld [vmem:[#allocation7 + $0x250] sm:$0xff]
    %v804 = vld [vmem:[#allocation7 + $0x258] sm:$0xff]
    %v805 = vld [vmem:[#allocation7 + $0x260] sm:$0xff]
    %v806 = vld [vmem:[#allocation7 + $0x268] sm:$0xff]
    %v807 = vld [vmem:[#allocation7 + $0x270] sm:$0xff]
    %v808 = vld [vmem:[#allocation7 + $0x278] sm:$0xff]
    %v809 = vld [vmem:[#allocation7 + $0x280] sm:$0xff]
    %v810 = vld [vmem:[#allocation7 + $0x288] sm:$0xff]
    %v811 = vld [vmem:[#allocation7 + $0x290] sm:$0xff]
    %v812 = vld [vmem:[#allocation7 + $0x298] sm:$0xff]
    %v813 = vld [vmem:[#allocation7 + $0x2a0] sm:$0xff]
    %v814 = vld [vmem:[#allocation7 + $0x2a8] sm:$0xff]
    %v815 = vld [vmem:[#allocation7 + $0x2b0] sm:$0xff]
    %v816 = vld [vmem:[#allocation7 + $0x2b8] sm:$0xff]
    %v817 = vld [vmem:[#allocation7 + $0x2c0] sm:$0xff]
    %v818 = vld [vmem:[#allocation7 + $0x2c8] sm:$0xff]
    %v819 = vld [vmem:[#allocation7 + $0x2d0] sm:$0xff]
    %v820 = vld [vmem:[#allocation7 + $0x2d8] sm:$0xff]
    %v821 = vld [vmem:[#allocation7 + $0x2e0] sm:$0xff]
    %v822 = vld [vmem:[#allocation7 + $0x2e8] sm:$0xff]
    %v823 = vld [vmem:[#allocation7 + $0x2f0] sm:$0xff]
    %v824 = vld [vmem:[#allocation7 + $0x2f8] sm:$0xff]
    %v825 = vld [vmem:[#allocation7 + $0x300] sm:$0xff]
    %v826 = vld [vmem:[#allocation7 + $0x308] sm:$0xff]
    %v827 = vld [vmem:[#allocation7 + $0x310] sm:$0xff]
    %v828 = vld [vmem:[#allocation7 + $0x318] sm:$0xff]
    %v829 = vld [vmem:[#allocation7 + $0x320] sm:$0xff]
    %v830 = vld [vmem:[#allocation7 + $0x328] sm:$0xff]
    %v831 = vld [vmem:[#allocation7 + $0x330] sm:$0xff]
    %v832 = vld [vmem:[#allocation7 + $0x338] sm:$0xff]
    %v833 = vld [vmem:[#allocation7 + $0x340] sm:$0xff]
    %v834 = vld [vmem:[#allocation7 + $0x348] sm:$0xff]
    %v835 = vld [vmem:[#allocation7 + $0x350] sm:$0xff]
    %v836 = vld [vmem:[#allocation7 + $0x358] sm:$0xff]
    %v837 = vld [vmem:[#allocation7 + $0x360] sm:$0xff]
    %v838 = vld [vmem:[#allocation7 + $0x368] sm:$0xff]
    %v839 = vld [vmem:[#allocation7 + $0x370] sm:$0xff]
    %v840 = vld [vmem:[#allocation7 + $0x378] sm:$0xff]
    %v841 = vld [vmem:[#allocation7 + $0x380] sm:$0xff]
    %v842 = vld [vmem:[#allocation7 + $0x388] sm:$0xff]
    %v843 = vld [vmem:[#allocation7 + $0x390] sm:$0xff]
    %v844 = vld [vmem:[#allocation7 + $0x398] sm:$0xff]
    %v845 = vld [vmem:[#allocation7 + $0x3a0] sm:$0xff]
    %v846 = vld [vmem:[#allocation7 + $0x3a8] sm:$0xff]
    %v847 = vld [vmem:[#allocation7 + $0x3b0] sm:$0xff]
    %v848 = vld [vmem:[#allocation7 + $0x3b8] sm:$0xff]
    %v849 = vld [vmem:[#allocation7 + $0x3c0] sm:$0xff]
    %v850 = vld [vmem:[#allocation7 + $0x3c8] sm:$0xff]
    %v851 = vld [vmem:[#allocation7 + $0x3d0] sm:$0xff]
    %v852 = vld [vmem:[#allocation7 + $0x3d8] sm:$0xff]
    %v853 = vld [vmem:[#allocation7 + $0x3e0] sm:$0xff]
    %v854 = vld [vmem:[#allocation7 + $0x3e8] sm:$0xff]
    %v855 = vld [vmem:[#allocation7 + $0x3f0] sm:$0xff]
    %v856 = vld [vmem:[#allocation7 + $0x3f8] sm:$0xff]
    %v857 = vld [vmem:[#allocation7 + $0x400] sm:$0xff]
    %v858 = vld [vmem:[#allocation7 + $0x408] sm:$0xff]
    %v859 = vld [vmem:[#allocation7 + $0x410] sm:$0xff]
    %v860 = vld [vmem:[#allocation7 + $0x418] sm:$0xff]
    %v861 = vld [vmem:[#allocation7 + $0x420] sm:$0xff]
    %v862 = vld [vmem:[#allocation7 + $0x428] sm:$0xff]
    %v863 = vld [vmem:[#allocation7 + $0x430] sm:$0xff]
    %v864 = vld [vmem:[#allocation7 + $0x438] sm:$0xff]
    %v865 = vld [vmem:[#allocation7 + $0x440] sm:$0xff]
    %v866 = vld [vmem:[#allocation7 + $0x448] sm:$0xff]
    %v867 = vld [vmem:[#allocation7 + $0x450] sm:$0xff]
    %v868 = vld [vmem:[#allocation7 + $0x458] sm:$0xff]
    %v869 = vld [vmem:[#allocation7 + $0x460] sm:$0xff]
    %v870 = vld [vmem:[#allocation7 + $0x468] sm:$0xff]
    %v871 = vld [vmem:[#allocation7 + $0x470] sm:$0xff]
    %v872 = vld [vmem:[#allocation7 + $0x478] sm:$0xff]
    %v873 = vld [vmem:[#allocation7 + $0x480] sm:$0xff]
    %v874 = vld [vmem:[#allocation7 + $0x488] sm:$0xff]
    %v875 = vld [vmem:[#allocation7 + $0x490] sm:$0xff]
    %v876 = vld [vmem:[#allocation7 + $0x498] sm:$0xff]
    %v877 = vld [vmem:[#allocation7 + $0x4a0] sm:$0xff]
    %v878 = vld [vmem:[#allocation7 + $0x4a8] sm:$0xff]
    %v879 = vld [vmem:[#allocation7 + $0x4b0] sm:$0xff]
    %v880 = vld [vmem:[#allocation7 + $0x4b8] sm:$0xff]
    %v881 = vld [vmem:[#allocation7 + $0x4c0] sm:$0xff]
    %v882 = vld [vmem:[#allocation7 + $0x4c8] sm:$0xff]
    %v883 = vld [vmem:[#allocation7 + $0x4d0] sm:$0xff]
    %v884 = vld [vmem:[#allocation7 + $0x4d8] sm:$0xff]
    %v885 = vld [vmem:[#allocation7 + $0x4e0] sm:$0xff]
    %v886 = vld [vmem:[#allocation7 + $0x4e8] sm:$0xff]
    %v887 = vld [vmem:[#allocation7 + $0x4f0] sm:$0xff]
    %v888 = vld [vmem:[#allocation7 + $0x4f8] sm:$0xff]
    %v889 = vld [vmem:[#allocation7 + $0x500] sm:$0xff]
    %v890 = vld [vmem:[#allocation7 + $0x508] sm:$0xff]
    %v891 = vld [vmem:[#allocation7 + $0x510] sm:$0xff]
    %v892 = vld [vmem:[#allocation7 + $0x518] sm:$0xff]
    %v893 = vld [vmem:[#allocation7 + $0x520] sm:$0xff]
    %v894 = vld [vmem:[#allocation7 + $0x528] sm:$0xff]
    %v895 = vld [vmem:[#allocation7 + $0x530] sm:$0xff]
    %v896 = vld [vmem:[#allocation7 + $0x538] sm:$0xff]
    %v897 = vld [vmem:[#allocation7 + $0x540] sm:$0xff]
    %v898 = vld [vmem:[#allocation7 + $0x548] sm:$0xff]
    %v899 = vld [vmem:[#allocation7 + $0x550] sm:$0xff]
    %v900 = vld [vmem:[#allocation7 + $0x558] sm:$0xff]
    %v901 = vld [vmem:[#allocation7 + $0x560] sm:$0xff]
    %v902 = vld [vmem:[#allocation7 + $0x568] sm:$0xff]
    %v903 = vld [vmem:[#allocation7 + $0x570] sm:$0xff]
    %v904 = vld [vmem:[#allocation7 + $0x578] sm:$0xff]
    %v905 = vld [vmem:[#allocation7 + $0x580] sm:$0xff]
    %v906 = vld [vmem:[#allocation7 + $0x588] sm:$0xff]
    %v907 = vld [vmem:[#allocation7 + $0x590] sm:$0xff]
    %v908 = vld [vmem:[#allocation7 + $0x598] sm:$0xff]
    %v909 = vld [vmem:[#allocation7 + $0x5a0] sm:$0xff]
    %v910 = vld [vmem:[#allocation7 + $0x5a8] sm:$0xff]
    %v911 = vld [vmem:[#allocation7 + $0x5b0] sm:$0xff]
    %v912 = vld [vmem:[#allocation7 + $0x5b8] sm:$0xff]
    %v913 = vld [vmem:[#allocation7 + $0x5c0] sm:$0xff]
    %v914 = vld [vmem:[#allocation7 + $0x5c8] sm:$0xff]
    %v915 = vld [vmem:[#allocation7 + $0x5d0] sm:$0xff]
    %v916 = vld [vmem:[#allocation7 + $0x5d8] sm:$0xff]
    %v917 = vld [vmem:[#allocation7 + $0x5e0] sm:$0xff]
    %v918 = vld [vmem:[#allocation7 + $0x5e8] sm:$0xff]
    %v919 = vld [vmem:[#allocation7 + $0x5f0] sm:$0xff]
    %v920 = vld [vmem:[#allocation7 + $0x5f8] sm:$0xff]
    %v921 = vld [vmem:[#allocation7 + $0x600] sm:$0xff]
    %v922 = vld [vmem:[#allocation7 + $0x608] sm:$0xff]
    %v923 = vld [vmem:[#allocation7 + $0x610] sm:$0xff]
    %v924 = vld [vmem:[#allocation7 + $0x618] sm:$0xff]
    %v925 = vld [vmem:[#allocation7 + $0x620] sm:$0xff]
    %v926 = vld [vmem:[#allocation7 + $0x628] sm:$0xff]
    %v927 = vld [vmem:[#allocation7 + $0x630] sm:$0xff]
    %v928 = vld [vmem:[#allocation7 + $0x638] sm:$0xff]
    %v929 = vld [vmem:[#allocation7 + $0x640] sm:$0xff]
    %v930 = vld [vmem:[#allocation7 + $0x648] sm:$0xff]
    %v931 = vld [vmem:[#allocation7 + $0x650] sm:$0xff]
    %v932 = vld [vmem:[#allocation7 + $0x658] sm:$0xff]
    %v933 = vld [vmem:[#allocation7 + $0x660] sm:$0xff]
    %v934 = vld [vmem:[#allocation7 + $0x668] sm:$0xff]
    %v935 = vld [vmem:[#allocation7 + $0x670] sm:$0xff]
    %v936 = vld [vmem:[#allocation7 + $0x678] sm:$0xff]
    %v937 = vld [vmem:[#allocation7 + $0x680] sm:$0xff]
    %v938 = vld [vmem:[#allocation7 + $0x688] sm:$0xff]
    %v939 = vld [vmem:[#allocation7 + $0x690] sm:$0xff]
    %v940 = vld [vmem:[#allocation7 + $0x698] sm:$0xff]
    %v941 = vld [vmem:[#allocation7 + $0x6a0] sm:$0xff]
    %v942 = vld [vmem:[#allocation7 + $0x6a8] sm:$0xff]
    %v943 = vld [vmem:[#allocation7 + $0x6b0] sm:$0xff]
    %v944 = vld [vmem:[#allocation7 + $0x6b8] sm:$0xff]
    %v945 = vld [vmem:[#allocation7 + $0x6c0] sm:$0xff]
    %v946 = vld [vmem:[#allocation7 + $0x6c8] sm:$0xff]
    %v947 = vld [vmem:[#allocation7 + $0x6d0] sm:$0xff]
    %v948 = vld [vmem:[#allocation7 + $0x6d8] sm:$0xff]
    %v949 = vld [vmem:[#allocation7 + $0x6e0] sm:$0xff]
    %v950 = vld [vmem:[#allocation7 + $0x6e8] sm:$0xff]
    %v951 = vld [vmem:[#allocation7 + $0x6f0] sm:$0xff]
    %v952 = vld [vmem:[#allocation7 + $0x6f8] sm:$0xff]
    %v953 = vld [vmem:[#allocation7 + $0x700] sm:$0xff]
    %v954 = vld [vmem:[#allocation7 + $0x708] sm:$0xff]
    %v955 = vld [vmem:[#allocation7 + $0x710] sm:$0xff]
    %v956 = vld [vmem:[#allocation7 + $0x718] sm:$0xff]
    %v957 = vld [vmem:[#allocation7 + $0x720] sm:$0xff]
    %v958 = vld [vmem:[#allocation7 + $0x728] sm:$0xff]
    %v959 = vld [vmem:[#allocation7 + $0x730] sm:$0xff]
    %v960 = vld [vmem:[#allocation7 + $0x738] sm:$0xff]
    %v961 = vld [vmem:[#allocation7 + $0x740] sm:$0xff]
    %v962 = vld [vmem:[#allocation7 + $0x748] sm:$0xff]
    %v963 = vld [vmem:[#allocation7 + $0x750] sm:$0xff]
    %v964 = vld [vmem:[#allocation7 + $0x758] sm:$0xff]
    %v965 = vld [vmem:[#allocation7 + $0x760] sm:$0xff]
    %v966 = vld [vmem:[#allocation7 + $0x768] sm:$0xff]
    %v967 = vld [vmem:[#allocation7 + $0x770] sm:$0xff]
    %v968 = vld [vmem:[#allocation7 + $0x778] sm:$0xff]
    %v969 = vld [vmem:[#allocation7 + $0x780] sm:$0xff]
    %v970 = vld [vmem:[#allocation7 + $0x788] sm:$0xff]
    %v971 = vld [vmem:[#allocation7 + $0x790] sm:$0xff]
    %v972 = vld [vmem:[#allocation7 + $0x798] sm:$0xff]
    %v973 = vld [vmem:[#allocation7 + $0x7a0] sm:$0xff]
    %v974 = vld [vmem:[#allocation7 + $0x7a8] sm:$0xff]
    %v975 = vld [vmem:[#allocation7 + $0x7b0] sm:$0xff]
    %v976 = vld [vmem:[#allocation7 + $0x7b8] sm:$0xff]
    %v977 = vld [vmem:[#allocation7 + $0x7c0] sm:$0xff]
    %v978 = vld [vmem:[#allocation7 + $0x7c8] sm:$0xff]
    %v979 = vld [vmem:[#allocation7 + $0x7d0] sm:$0xff]
    %v980 = vld [vmem:[#allocation7 + $0x7d8] sm:$0xff]
    %v981 = vld [vmem:[#allocation7 + $0x7e0] sm:$0xff]
    %v982 = vld [vmem:[#allocation7 + $0x7e8] sm:$0xff]
    %v983 = vld [vmem:[#allocation7 + $0x7f0] sm:$0xff]
    %v984 = vld [vmem:[#allocation7 + $0x7f8] sm:$0xff]
    %v985 = vld [vmem:[#allocation7 + $0x800] sm:$0xff]
    %v986 = vld [vmem:[#allocation7 + $0x808] sm:$0xff]
    %v987 = vld [vmem:[#allocation7 + $0x810] sm:$0xff]
    %v988 = vld [vmem:[#allocation7 + $0x818] sm:$0xff]
    %v989 = vld [vmem:[#allocation7 + $0x820] sm:$0xff]
    %v990 = vld [vmem:[#allocation7 + $0x828] sm:$0xff]
    %v991 = vld [vmem:[#allocation7 + $0x830] sm:$0xff]
    %v992 = vld [vmem:[#allocation7 + $0x838] sm:$0xff]
    %v993 = vld [vmem:[#allocation7 + $0x840] sm:$0xff]
    %v994 = vld [vmem:[#allocation7 + $0x848] sm:$0xff]
    %v995 = vld [vmem:[#allocation7 + $0x850] sm:$0xff]
    %v996 = vld [vmem:[#allocation7 + $0x858] sm:$0xff]
    %v997 = vld [vmem:[#allocation7 + $0x860] sm:$0xff]
    %v998 = vld [vmem:[#allocation7 + $0x868] sm:$0xff]
    %v999 = vld [vmem:[#allocation7 + $0x870] sm:$0xff]
    %v1000 = vld [vmem:[#allocation7 + $0x878] sm:$0xff]
    %v1001 = vld [vmem:[#allocation7 + $0x880] sm:$0xff]
    %v1002 = vld [vmem:[#allocation7 + $0x888] sm:$0xff]
    %v1003 = vld [vmem:[#allocation7 + $0x890] sm:$0xff]
    %v1004 = vld [vmem:[#allocation7 + $0x898] sm:$0xff]
    %v1005 = vld [vmem:[#allocation7 + $0x8a0] sm:$0xff]
    %v1006 = vld [vmem:[#allocation7 + $0x8a8] sm:$0xff]
    %v1007 = vld [vmem:[#allocation7 + $0x8b0] sm:$0xff]
    %v1008 = vld [vmem:[#allocation7 + $0x8b8] sm:$0xff]
    %v1009 = vld [vmem:[#allocation7 + $0x8c0] sm:$0xff]
    %v1010 = vld [vmem:[#allocation7 + $0x8c8] sm:$0xff]
    %v1011 = vld [vmem:[#allocation7 + $0x8d0] sm:$0xff]
    %v1012 = vld [vmem:[#allocation7 + $0x8d8] sm:$0xff]
    %v1013 = vld [vmem:[#allocation7 + $0x8e0] sm:$0xff]
    %v1014 = vld [vmem:[#allocation7 + $0x8e8] sm:$0xff]
    %v1015 = vld [vmem:[#allocation7 + $0x8f0] sm:$0xff]
    %v1016 = vld [vmem:[#allocation7 + $0x8f8] sm:$0xff]
    %v1018 = vperm.slane %v721, 0
    %v1019 = vperm.slane %v721, 1
    %v1020 = vperm.slane %v721, 2
    %v1021 = vperm.slane %v721, 3
    %v1022 = vperm.slane %v721, 4
    %v1023 = vperm.slane %v721, 5
    %v1318 = vunpack.c.l.b16 %v729
    %v1319 = vunpack.c.h.b16 %v729
    %v1320 = vunpack.c.l.b16 %v730
    %v1321 = vunpack.c.h.b16 %v730
    %v1322 = vunpack.c.l.b16 %v731
    %v1323 = vunpack.c.h.b16 %v731
    %v1324 = vunpack.c.l.b16 %v732
    %v1325 = vunpack.c.h.b16 %v732
    %v1326 = vunpack.c.l.b16 %v733
    %v1327 = vunpack.c.h.b16 %v733
    %v1328 = vunpack.c.l.b16 %v734
    %v1329 = vunpack.c.h.b16 %v734
    %v1330 = vunpack.c.l.b16 %v735
    %v1331 = vunpack.c.h.b16 %v735
    %v1332 = vunpack.c.l.b16 %v736
    %v1333 = vunpack.c.h.b16 %v736
    %v1334 = vunpack.c.l.b16 %v737
    %v1335 = vunpack.c.h.b16 %v737
    %v1336 = vunpack.c.l.b16 %v738
    %v1337 = vunpack.c.h.b16 %v738
    %v1338 = vunpack.c.l.b16 %v739
    %v1339 = vunpack.c.h.b16 %v739
    %v1340 = vunpack.c.l.b16 %v740
    %v1341 = vunpack.c.h.b16 %v740
    %v1342 = vunpack.c.l.b16 %v741
    %v1343 = vunpack.c.h.b16 %v741
    %v1344 = vunpack.c.l.b16 %v742
    %v1345 = vunpack.c.h.b16 %v742
    %v1346 = vunpack.c.l.b16 %v743
    %v1347 = vunpack.c.h.b16 %v743
    %v1348 = vunpack.c.l.b16 %v744
    %v1349 = vunpack.c.h.b16 %v744
    %v1350 = vunpack.c.l.b16 %v745
    %v1351 = vunpack.c.h.b16 %v745
    %v1352 = vunpack.c.l.b16 %v746
    %v1353 = vunpack.c.h.b16 %v746
    %v1354 = vunpack.c.l.b16 %v747
    %v1355 = vunpack.c.h.b16 %v747
    %v1356 = vunpack.c.l.b16 %v748
    %v1357 = vunpack.c.h.b16 %v748
    %v1358 = vunpack.c.l.b16 %v749
    %v1359 = vunpack.c.h.b16 %v749
    %v1360 = vunpack.c.l.b16 %v750
    %v1361 = vunpack.c.h.b16 %v750
    %v1362 = vunpack.c.l.b16 %v751
    %v1363 = vunpack.c.h.b16 %v751
    %v1364 = vunpack.c.l.b16 %v752
    %v1365 = vunpack.c.h.b16 %v752
    %v1366 = vunpack.c.l.b16 %v753
    %v1367 = vunpack.c.h.b16 %v753
    %v1368 = vunpack.c.l.b16 %v754
    %v1369 = vunpack.c.h.b16 %v754
    %v1370 = vunpack.c.l.b16 %v755
    %v1371 = vunpack.c.h.b16 %v755
    %v1372 = vunpack.c.l.b16 %v756
    %v1373 = vunpack.c.h.b16 %v756
    %v1374 = vunpack.c.l.b16 %v757
    %v1375 = vunpack.c.h.b16 %v757
    %v1376 = vunpack.c.l.b16 %v758
    %v1377 = vunpack.c.h.b16 %v758
    %v1378 = vunpack.c.l.b16 %v759
    %v1379 = vunpack.c.h.b16 %v759
    %v1380 = vunpack.c.l.b16 %v760
    %v1381 = vunpack.c.h.b16 %v760
    %v1382 = vunpack.c.l.b16 %v761
    %v1383 = vunpack.c.h.b16 %v761
    %v1384 = vunpack.c.l.b16 %v762
    %v1385 = vunpack.c.h.b16 %v762
    %v1386 = vunpack.c.l.b16 %v763
    %v1387 = vunpack.c.h.b16 %v763
    %v1388 = vunpack.c.l.b16 %v764
    %v1389 = vunpack.c.h.b16 %v764
    %v1390 = vunpack.c.l.b16 %v765
    %v1391 = vunpack.c.h.b16 %v765
    %v1392 = vunpack.c.l.b16 %v766
    %v1393 = vunpack.c.h.b16 %v766
    %v1394 = vunpack.c.l.b16 %v767
    %v1395 = vunpack.c.h.b16 %v767
    %v1396 = vunpack.c.l.b16 %v768
    %v1397 = vunpack.c.h.b16 %v768
    %v1398 = vunpack.c.l.b16 %v769
    %v1399 = vunpack.c.h.b16 %v769
    %v1400 = vunpack.c.l.b16 %v770
    %v1401 = vunpack.c.h.b16 %v770
    %v1402 = vunpack.c.l.b16 %v771
    %v1403 = vunpack.c.h.b16 %v771
    %v1404 = vunpack.c.l.b16 %v772
    %v1405 = vunpack.c.h.b16 %v772
    %v1406 = vunpack.c.l.b16 %v773
    %v1407 = vunpack.c.h.b16 %v773
    %v1408 = vunpack.c.l.b16 %v774
    %v1409 = vunpack.c.h.b16 %v774
    %v1410 = vunpack.c.l.b16 %v775
    %v1411 = vunpack.c.h.b16 %v775
    %v1412 = vunpack.c.l.b16 %v776
    %v1413 = vunpack.c.h.b16 %v776
    %v1414 = vunpack.c.l.b16 %v777
    %v1415 = vunpack.c.h.b16 %v777
    %v1416 = vunpack.c.l.b16 %v778
    %v1417 = vunpack.c.h.b16 %v778
    %v1418 = vunpack.c.l.b16 %v779
    %v1419 = vunpack.c.h.b16 %v779
    %v1420 = vunpack.c.l.b16 %v780
    %v1421 = vunpack.c.h.b16 %v780
    %v1422 = vunpack.c.l.b16 %v781
    %v1423 = vunpack.c.h.b16 %v781
    %v1424 = vunpack.c.l.b16 %v782
    %v1425 = vunpack.c.h.b16 %v782
    %v1426 = vunpack.c.l.b16 %v783
    %v1427 = vunpack.c.h.b16 %v783
    %v1428 = vunpack.c.l.b16 %v784
    %v1429 = vunpack.c.h.b16 %v784
    %v1430 = vunpack.c.l.b16 %v785
    %v1431 = vunpack.c.h.b16 %v785
    %v1432 = vunpack.c.l.b16 %v786
    %v1433 = vunpack.c.h.b16 %v786
    %v1434 = vunpack.c.l.b16 %v787
    %v1435 = vunpack.c.h.b16 %v787
    %v1436 = vunpack.c.l.b16 %v788
    %v1437 = vunpack.c.h.b16 %v788
    %v1438 = vunpack.c.l.b16 %v789
    %v1439 = vunpack.c.h.b16 %v789
    %v1440 = vunpack.c.l.b16 %v790
    %v1441 = vunpack.c.h.b16 %v790
    %v1442 = vunpack.c.l.b16 %v791
    %v1443 = vunpack.c.h.b16 %v791
    %v1444 = vunpack.c.l.b16 %v792
    %v1445 = vunpack.c.h.b16 %v792
    %v1446 = vunpack.c.l.b16 %v793
    %v1447 = vunpack.c.h.b16 %v793
    %v1448 = vunpack.c.l.b16 %v794
    %v1449 = vunpack.c.h.b16 %v794
    %v1450 = vunpack.c.l.b16 %v795
    %v1451 = vunpack.c.h.b16 %v795
    %v1452 = vunpack.c.l.b16 %v796
    %v1453 = vunpack.c.h.b16 %v796
    %v1454 = vunpack.c.l.b16 %v797
    %v1455 = vunpack.c.h.b16 %v797
    %v1456 = vunpack.c.l.b16 %v798
    %v1457 = vunpack.c.h.b16 %v798
    %v1458 = vunpack.c.l.b16 %v799
    %v1459 = vunpack.c.h.b16 %v799
    %v1460 = vunpack.c.l.b16 %v800
    %v1461 = vunpack.c.h.b16 %v800
    %v1462 = vunpack.c.l.b16 %v801
    %v1463 = vunpack.c.h.b16 %v801
    %v1464 = vunpack.c.l.b16 %v802
    %v1465 = vunpack.c.h.b16 %v802
    %v1466 = vunpack.c.l.b16 %v803
    %v1467 = vunpack.c.h.b16 %v803
    %v1468 = vunpack.c.l.b16 %v804
    %v1469 = vunpack.c.h.b16 %v804
    %v1470 = vunpack.c.l.b16 %v805
    %v1471 = vunpack.c.h.b16 %v805
    %v1472 = vunpack.c.l.b16 %v806
    %v1473 = vunpack.c.h.b16 %v806
    %v1474 = vunpack.c.l.b16 %v807
    %v1475 = vunpack.c.h.b16 %v807
    %v1476 = vunpack.c.l.b16 %v808
    %v1477 = vunpack.c.h.b16 %v808
    %v1478 = vunpack.c.l.b16 %v809
    %v1479 = vunpack.c.h.b16 %v809
    %v1480 = vunpack.c.l.b16 %v810
    %v1481 = vunpack.c.h.b16 %v810
    %v1482 = vunpack.c.l.b16 %v811
    %v1483 = vunpack.c.h.b16 %v811
    %v1484 = vunpack.c.l.b16 %v812
    %v1485 = vunpack.c.h.b16 %v812
    %v1486 = vunpack.c.l.b16 %v813
    %v1487 = vunpack.c.h.b16 %v813
    %v1488 = vunpack.c.l.b16 %v814
    %v1489 = vunpack.c.h.b16 %v814
    %v1490 = vunpack.c.l.b16 %v815
    %v1491 = vunpack.c.h.b16 %v815
    %v1492 = vunpack.c.l.b16 %v816
    %v1493 = vunpack.c.h.b16 %v816
    %v1494 = vunpack.c.l.b16 %v817
    %v1495 = vunpack.c.h.b16 %v817
    %v1496 = vunpack.c.l.b16 %v818
    %v1497 = vunpack.c.h.b16 %v818
    %v1498 = vunpack.c.l.b16 %v819
    %v1499 = vunpack.c.h.b16 %v819
    %v1500 = vunpack.c.l.b16 %v820
    %v1501 = vunpack.c.h.b16 %v820
    %v1502 = vunpack.c.l.b16 %v821
    %v1503 = vunpack.c.h.b16 %v821
    %v1504 = vunpack.c.l.b16 %v822
    %v1505 = vunpack.c.h.b16 %v822
    %v1506 = vunpack.c.l.b16 %v823
    %v1507 = vunpack.c.h.b16 %v823
    %v1508 = vunpack.c.l.b16 %v824
    %v1509 = vunpack.c.h.b16 %v824
    %v1510 = vunpack.c.l.b16 %v825
    %v1511 = vunpack.c.h.b16 %v825
    %v1512 = vunpack.c.l.b16 %v826
    %v1513 = vunpack.c.h.b16 %v826
    %v1514 = vunpack.c.l.b16 %v827
    %v1515 = vunpack.c.h.b16 %v827
    %v1516 = vunpack.c.l.b16 %v828
    %v1517 = vunpack.c.h.b16 %v828
    %v1518 = vunpack.c.l.b16 %v829
    %v1519 = vunpack.c.h.b16 %v829
    %v1520 = vunpack.c.l.b16 %v830
    %v1521 = vunpack.c.h.b16 %v830
    %v1522 = vunpack.c.l.b16 %v831
    %v1523 = vunpack.c.h.b16 %v831
    %v1524 = vunpack.c.l.b16 %v832
    %v1525 = vunpack.c.h.b16 %v832
    %v1526 = vunpack.c.l.b16 %v833
    %v1527 = vunpack.c.h.b16 %v833
    %v1528 = vunpack.c.l.b16 %v834
    %v1529 = vunpack.c.h.b16 %v834
    %v1530 = vunpack.c.l.b16 %v835
    %v1531 = vunpack.c.h.b16 %v835
    %v1532 = vunpack.c.l.b16 %v836
    %v1533 = vunpack.c.h.b16 %v836
    %v1534 = vunpack.c.l.b16 %v837
    %v1535 = vunpack.c.h.b16 %v837
    %v1536 = vunpack.c.l.b16 %v838
    %v1537 = vunpack.c.h.b16 %v838
    %v1538 = vunpack.c.l.b16 %v839
    %v1539 = vunpack.c.h.b16 %v839
    %v1540 = vunpack.c.l.b16 %v840
    %v1541 = vunpack.c.h.b16 %v840
    %v1542 = vunpack.c.l.b16 %v841
    %v1543 = vunpack.c.h.b16 %v841
    %v1544 = vunpack.c.l.b16 %v842
    %v1545 = vunpack.c.h.b16 %v842
    %v1546 = vunpack.c.l.b16 %v843
    %v1547 = vunpack.c.h.b16 %v843
    %v1548 = vunpack.c.l.b16 %v844
    %v1549 = vunpack.c.h.b16 %v844
    %v1550 = vunpack.c.l.b16 %v845
    %v1551 = vunpack.c.h.b16 %v845
    %v1552 = vunpack.c.l.b16 %v846
    %v1553 = vunpack.c.h.b16 %v846
    %v1554 = vunpack.c.l.b16 %v847
    %v1555 = vunpack.c.h.b16 %v847
    %v1556 = vunpack.c.l.b16 %v848
    %v1557 = vunpack.c.h.b16 %v848
    %v1558 = vunpack.c.l.b16 %v849
    %v1559 = vunpack.c.h.b16 %v849
    %v1560 = vunpack.c.l.b16 %v850
    %v1561 = vunpack.c.h.b16 %v850
    %v1562 = vunpack.c.l.b16 %v851
    %v1563 = vunpack.c.h.b16 %v851
    %v1564 = vunpack.c.l.b16 %v852
    %v1565 = vunpack.c.h.b16 %v852
    %v1566 = vunpack.c.l.b16 %v853
    %v1567 = vunpack.c.h.b16 %v853
    %v1568 = vunpack.c.l.b16 %v854
    %v1569 = vunpack.c.h.b16 %v854
    %v1570 = vunpack.c.l.b16 %v855
    %v1571 = vunpack.c.h.b16 %v855
    %v1572 = vunpack.c.l.b16 %v856
    %v1573 = vunpack.c.h.b16 %v856
    %v1574 = vunpack.c.l.b16 %v857
    %v1575 = vunpack.c.h.b16 %v857
    %v1576 = vunpack.c.l.b16 %v858
    %v1577 = vunpack.c.h.b16 %v858
    %v1578 = vunpack.c.l.b16 %v859
    %v1579 = vunpack.c.h.b16 %v859
    %v1580 = vunpack.c.l.b16 %v860
    %v1581 = vunpack.c.h.b16 %v860
    %v1582 = vunpack.c.l.b16 %v861
    %v1583 = vunpack.c.h.b16 %v861
    %v1584 = vunpack.c.l.b16 %v862
    %v1585 = vunpack.c.h.b16 %v862
    %v1586 = vunpack.c.l.b16 %v863
    %v1587 = vunpack.c.h.b16 %v863
    %v1588 = vunpack.c.l.b16 %v864
    %v1589 = vunpack.c.h.b16 %v864
    %v1590 = vunpack.c.l.b16 %v865
    %v1591 = vunpack.c.h.b16 %v865
    %v1592 = vunpack.c.l.b16 %v866
    %v1593 = vunpack.c.h.b16 %v866
    %v1594 = vunpack.c.l.b16 %v867
    %v1595 = vunpack.c.h.b16 %v867
    %v1596 = vunpack.c.l.b16 %v868
    %v1597 = vunpack.c.h.b16 %v868
    %v1598 = vunpack.c.l.b16 %v869
    %v1599 = vunpack.c.h.b16 %v869
    %v1600 = vunpack.c.l.b16 %v870
    %v1601 = vunpack.c.h.b16 %v870
    %v1602 = vunpack.c.l.b16 %v871
    %v1603 = vunpack.c.h.b16 %v871
    %v1604 = vunpack.c.l.b16 %v872
    %v1605 = vunpack.c.h.b16 %v872
    %v1606 = vunpack.c.l.b16 %v873
    %v1607 = vunpack.c.h.b16 %v873
    %v1608 = vunpack.c.l.b16 %v874
    %v1609 = vunpack.c.h.b16 %v874
    %v1610 = vunpack.c.l.b16 %v875
    %v1611 = vunpack.c.h.b16 %v875
    %v1612 = vunpack.c.l.b16 %v876
    %v1613 = vunpack.c.h.b16 %v876
    %v1614 = vunpack.c.l.b16 %v877
    %v1615 = vunpack.c.h.b16 %v877
    %v1616 = vunpack.c.l.b16 %v878
    %v1617 = vunpack.c.h.b16 %v878
    %v1618 = vunpack.c.l.b16 %v879
    %v1619 = vunpack.c.h.b16 %v879
    %v1620 = vunpack.c.l.b16 %v880
    %v1621 = vunpack.c.h.b16 %v880
    %v1622 = vunpack.c.l.b16 %v881
    %v1623 = vunpack.c.h.b16 %v881
    %v1624 = vunpack.c.l.b16 %v882
    %v1625 = vunpack.c.h.b16 %v882
    %v1626 = vunpack.c.l.b16 %v883
    %v1627 = vunpack.c.h.b16 %v883
    %v1628 = vunpack.c.l.b16 %v884
    %v1629 = vunpack.c.h.b16 %v884
    %v1630 = vunpack.c.l.b16 %v885
    %v1631 = vunpack.c.h.b16 %v885
    %v1632 = vunpack.c.l.b16 %v886
    %v1633 = vunpack.c.h.b16 %v886
    %v1634 = vunpack.c.l.b16 %v887
    %v1635 = vunpack.c.h.b16 %v887
    %v1636 = vunpack.c.l.b16 %v888
    %v1637 = vunpack.c.h.b16 %v888
    %v1638 = vunpack.c.l.b16 %v889
    %v1639 = vunpack.c.h.b16 %v889
    %v1640 = vunpack.c.l.b16 %v890
    %v1641 = vunpack.c.h.b16 %v890
    %v1642 = vunpack.c.l.b16 %v891
    %v1643 = vunpack.c.h.b16 %v891
    %v1644 = vunpack.c.l.b16 %v892
    %v1645 = vunpack.c.h.b16 %v892
    %v1646 = vunpack.c.l.b16 %v893
    %v1647 = vunpack.c.h.b16 %v893
    %v1648 = vunpack.c.l.b16 %v894
    %v1649 = vunpack.c.h.b16 %v894
    %v1650 = vunpack.c.l.b16 %v895
    %v1651 = vunpack.c.h.b16 %v895
    %v1652 = vunpack.c.l.b16 %v896
    %v1653 = vunpack.c.h.b16 %v896
    %v1654 = vunpack.c.l.b16 %v897
    %v1655 = vunpack.c.h.b16 %v897
    %v1656 = vunpack.c.l.b16 %v898
    %v1657 = vunpack.c.h.b16 %v898
    %v1658 = vunpack.c.l.b16 %v899
    %v1659 = vunpack.c.h.b16 %v899
    %v1660 = vunpack.c.l.b16 %v900
    %v1661 = vunpack.c.h.b16 %v900
    %v1662 = vunpack.c.l.b16 %v901
    %v1663 = vunpack.c.h.b16 %v901
    %v1664 = vunpack.c.l.b16 %v902
    %v1665 = vunpack.c.h.b16 %v902
    %v1666 = vunpack.c.l.b16 %v903
    %v1667 = vunpack.c.h.b16 %v903
    %v1668 = vunpack.c.l.b16 %v904
    %v1669 = vunpack.c.h.b16 %v904
    %v1670 = vunpack.c.l.b16 %v905
    %v1671 = vunpack.c.h.b16 %v905
    %v1672 = vunpack.c.l.b16 %v906
    %v1673 = vunpack.c.h.b16 %v906
    %v1674 = vunpack.c.l.b16 %v907
    %v1675 = vunpack.c.h.b16 %v907
    %v1676 = vunpack.c.l.b16 %v908
    %v1677 = vunpack.c.h.b16 %v908
    %v1678 = vunpack.c.l.b16 %v909
    %v1679 = vunpack.c.h.b16 %v909
    %v1680 = vunpack.c.l.b16 %v910
    %v1681 = vunpack.c.h.b16 %v910
    %v1682 = vunpack.c.l.b16 %v911
    %v1683 = vunpack.c.h.b16 %v911
    %v1684 = vunpack.c.l.b16 %v912
    %v1685 = vunpack.c.h.b16 %v912
    %v1686 = vunpack.c.l.b16 %v913
    %v1687 = vunpack.c.h.b16 %v913
    %v1688 = vunpack.c.l.b16 %v914
    %v1689 = vunpack.c.h.b16 %v914
    %v1690 = vunpack.c.l.b16 %v915
    %v1691 = vunpack.c.h.b16 %v915
    %v1692 = vunpack.c.l.b16 %v916
    %v1693 = vunpack.c.h.b16 %v916
    %v1694 = vunpack.c.l.b16 %v917
    %v1695 = vunpack.c.h.b16 %v917
    %v1696 = vunpack.c.l.b16 %v918
    %v1697 = vunpack.c.h.b16 %v918
    %v1698 = vunpack.c.l.b16 %v919
    %v1699 = vunpack.c.h.b16 %v919
    %v1700 = vunpack.c.l.b16 %v920
    %v1701 = vunpack.c.h.b16 %v920
    %v1702 = vunpack.c.l.b16 %v921
    %v1703 = vunpack.c.h.b16 %v921
    %v1704 = vunpack.c.l.b16 %v922
    %v1705 = vunpack.c.h.b16 %v922
    %v1706 = vunpack.c.l.b16 %v923
    %v1707 = vunpack.c.h.b16 %v923
    %v1708 = vunpack.c.l.b16 %v924
    %v1709 = vunpack.c.h.b16 %v924
    %v1710 = vunpack.c.l.b16 %v925
    %v1711 = vunpack.c.h.b16 %v925
    %v1712 = vunpack.c.l.b16 %v926
    %v1713 = vunpack.c.h.b16 %v926
    %v1714 = vunpack.c.l.b16 %v927
    %v1715 = vunpack.c.h.b16 %v927
    %v1716 = vunpack.c.l.b16 %v928
    %v1717 = vunpack.c.h.b16 %v928
    %v1718 = vunpack.c.l.b16 %v929
    %v1719 = vunpack.c.h.b16 %v929
    %v1720 = vunpack.c.l.b16 %v930
    %v1721 = vunpack.c.h.b16 %v930
    %v1722 = vunpack.c.l.b16 %v931
    %v1723 = vunpack.c.h.b16 %v931
    %v1724 = vunpack.c.l.b16 %v932
    %v1725 = vunpack.c.h.b16 %v932
    %v1726 = vunpack.c.l.b16 %v933
    %v1727 = vunpack.c.h.b16 %v933
    %v1728 = vunpack.c.l.b16 %v934
    %v1729 = vunpack.c.h.b16 %v934
    %v1730 = vunpack.c.l.b16 %v935
    %v1731 = vunpack.c.h.b16 %v935
    %v1732 = vunpack.c.l.b16 %v936
    %v1733 = vunpack.c.h.b16 %v936
    %v1734 = vunpack.c.l.b16 %v937
    %v1735 = vunpack.c.h.b16 %v937
    %v1736 = vunpack.c.l.b16 %v938
    %v1737 = vunpack.c.h.b16 %v938
    %v1738 = vunpack.c.l.b16 %v939
    %v1739 = vunpack.c.h.b16 %v939
    %v1740 = vunpack.c.l.b16 %v940
    %v1741 = vunpack.c.h.b16 %v940
    %v1742 = vunpack.c.l.b16 %v941
    %v1743 = vunpack.c.h.b16 %v941
    %v1744 = vunpack.c.l.b16 %v942
    %v1745 = vunpack.c.h.b16 %v942
    %v1746 = vunpack.c.l.b16 %v943
    %v1747 = vunpack.c.h.b16 %v943
    %v1748 = vunpack.c.l.b16 %v944
    %v1749 = vunpack.c.h.b16 %v944
    %v1750 = vunpack.c.l.b16 %v945
    %v1751 = vunpack.c.h.b16 %v945
    %v1752 = vunpack.c.l.b16 %v946
    %v1753 = vunpack.c.h.b16 %v946
    %v1754 = vunpack.c.l.b16 %v947
    %v1755 = vunpack.c.h.b16 %v947
    %v1756 = vunpack.c.l.b16 %v948
    %v1757 = vunpack.c.h.b16 %v948
    %v1758 = vunpack.c.l.b16 %v949
    %v1759 = vunpack.c.h.b16 %v949
    %v1760 = vunpack.c.l.b16 %v950
    %v1761 = vunpack.c.h.b16 %v950
    %v1762 = vunpack.c.l.b16 %v951
    %v1763 = vunpack.c.h.b16 %v951
    %v1764 = vunpack.c.l.b16 %v952
    %v1765 = vunpack.c.h.b16 %v952
    %v1766 = vunpack.c.l.b16 %v953
    %v1767 = vunpack.c.h.b16 %v953
    %v1768 = vunpack.c.l.b16 %v954
    %v1769 = vunpack.c.h.b16 %v954
    %v1770 = vunpack.c.l.b16 %v955
    %v1771 = vunpack.c.h.b16 %v955
    %v1772 = vunpack.c.l.b16 %v956
    %v1773 = vunpack.c.h.b16 %v956
    %v1774 = vunpack.c.l.b16 %v957
    %v1775 = vunpack.c.h.b16 %v957
    %v1776 = vunpack.c.l.b16 %v958
    %v1777 = vunpack.c.h.b16 %v958
    %v1778 = vunpack.c.l.b16 %v959
    %v1779 = vunpack.c.h.b16 %v959
    %v1780 = vunpack.c.l.b16 %v960
    %v1781 = vunpack.c.h.b16 %v960
    %v1782 = vunpack.c.l.b16 %v961
    %v1783 = vunpack.c.h.b16 %v961
    %v1784 = vunpack.c.l.b16 %v962
    %v1785 = vunpack.c.h.b16 %v962
    %v1786 = vunpack.c.l.b16 %v963
    %v1787 = vunpack.c.h.b16 %v963
    %v1788 = vunpack.c.l.b16 %v964
    %v1789 = vunpack.c.h.b16 %v964
    %v1790 = vunpack.c.l.b16 %v965
    %v1791 = vunpack.c.h.b16 %v965
    %v1792 = vunpack.c.l.b16 %v966
    %v1793 = vunpack.c.h.b16 %v966
    %v1794 = vunpack.c.l.b16 %v967
    %v1795 = vunpack.c.h.b16 %v967
    %v1796 = vunpack.c.l.b16 %v968
    %v1797 = vunpack.c.h.b16 %v968
    %v1798 = vunpack.c.l.b16 %v969
    %v1799 = vunpack.c.h.b16 %v969
    %v1800 = vunpack.c.l.b16 %v970
    %v1801 = vunpack.c.h.b16 %v970
    %v1802 = vunpack.c.l.b16 %v971
    %v1803 = vunpack.c.h.b16 %v971
    %v1804 = vunpack.c.l.b16 %v972
    %v1805 = vunpack.c.h.b16 %v972
    %v1806 = vunpack.c.l.b16 %v973
    %v1807 = vunpack.c.h.b16 %v973
    %v1808 = vunpack.c.l.b16 %v974
    %v1809 = vunpack.c.h.b16 %v974
    %v1810 = vunpack.c.l.b16 %v975
    %v1811 = vunpack.c.h.b16 %v975
    %v1812 = vunpack.c.l.b16 %v976
    %v1813 = vunpack.c.h.b16 %v976
    %v1814 = vunpack.c.l.b16 %v977
    %v1815 = vunpack.c.h.b16 %v977
    %v1816 = vunpack.c.l.b16 %v978
    %v1817 = vunpack.c.h.b16 %v978
    %v1818 = vunpack.c.l.b16 %v979
    %v1819 = vunpack.c.h.b16 %v979
    %v1820 = vunpack.c.l.b16 %v980
    %v1821 = vunpack.c.h.b16 %v980
    %v1822 = vunpack.c.l.b16 %v981
    %v1823 = vunpack.c.h.b16 %v981
    %v1824 = vunpack.c.l.b16 %v982
    %v1825 = vunpack.c.h.b16 %v982
    %v1826 = vunpack.c.l.b16 %v983
    %v1827 = vunpack.c.h.b16 %v983
    %v1828 = vunpack.c.l.b16 %v984
    %v1829 = vunpack.c.h.b16 %v984
    %v1830 = vunpack.c.l.b16 %v985
    %v1831 = vunpack.c.h.b16 %v985
    %v1832 = vunpack.c.l.b16 %v986
    %v1833 = vunpack.c.h.b16 %v986
    %v1834 = vunpack.c.l.b16 %v987
    %v1835 = vunpack.c.h.b16 %v987
    %v1836 = vunpack.c.l.b16 %v988
    %v1837 = vunpack.c.h.b16 %v988
    %v1838 = vunpack.c.l.b16 %v989
    %v1839 = vunpack.c.h.b16 %v989
    %v1840 = vunpack.c.l.b16 %v990
    %v1841 = vunpack.c.h.b16 %v990
    %v1842 = vunpack.c.l.b16 %v991
    %v1843 = vunpack.c.h.b16 %v991
    %v1844 = vunpack.c.l.b16 %v992
    %v1845 = vunpack.c.h.b16 %v992
    %v1846 = vunpack.c.l.b16 %v993
    %v1847 = vunpack.c.h.b16 %v993
    %v1848 = vunpack.c.l.b16 %v994
    %v1849 = vunpack.c.h.b16 %v994
    %v1850 = vunpack.c.l.b16 %v995
    %v1851 = vunpack.c.h.b16 %v995
    %v1852 = vunpack.c.l.b16 %v996
    %v1853 = vunpack.c.h.b16 %v996
    %v1854 = vunpack.c.l.b16 %v997
    %v1855 = vunpack.c.h.b16 %v997
    %v1856 = vunpack.c.l.b16 %v998
    %v1857 = vunpack.c.h.b16 %v998
    %v1858 = vunpack.c.l.b16 %v999
    %v1859 = vunpack.c.h.b16 %v999
    %v1860 = vunpack.c.l.b16 %v1000
    %v1861 = vunpack.c.h.b16 %v1000
    %v1862 = vunpack.c.l.b16 %v1001
    %v1863 = vunpack.c.h.b16 %v1001
    %v1864 = vunpack.c.l.b16 %v1002
    %v1865 = vunpack.c.h.b16 %v1002
    %v1866 = vunpack.c.l.b16 %v1003
    %v1867 = vunpack.c.h.b16 %v1003
    %v1868 = vunpack.c.l.b16 %v1004
    %v1869 = vunpack.c.h.b16 %v1004
    %v1870 = vunpack.c.l.b16 %v1005
    %v1871 = vunpack.c.h.b16 %v1005
    %v1872 = vunpack.c.l.b16 %v1006
    %v1873 = vunpack.c.h.b16 %v1006
    %v1874 = vunpack.c.l.b16 %v1007
    %v1875 = vunpack.c.h.b16 %v1007
    %v1876 = vunpack.c.l.b16 %v1008
    %v1877 = vunpack.c.h.b16 %v1008
    %v1878 = vunpack.c.l.b16 %v1009
    %v1879 = vunpack.c.h.b16 %v1009
    %v1880 = vunpack.c.l.b16 %v1010
    %v1881 = vunpack.c.h.b16 %v1010
    %v1882 = vunpack.c.l.b16 %v1011
    %v1883 = vunpack.c.h.b16 %v1011
    %v1884 = vunpack.c.l.b16 %v1012
    %v1885 = vunpack.c.h.b16 %v1012
    %v1886 = vunpack.c.l.b16 %v1013
    %v1887 = vunpack.c.h.b16 %v1013
    %v1888 = vunpack.c.l.b16 %v1014
    %v1889 = vunpack.c.h.b16 %v1014
    %v1890 = vunpack.c.l.b16 %v1015
    %v1891 = vunpack.c.h.b16 %v1015
    %v1892 = vunpack.c.l.b16 %v1016
    %v1893 = vunpack.c.h.b16 %v1016
    %v1894 = vpack.c.b16 %v1324, %v1318
    %v1895 = vpack.c.b16 %v1325, %v1319
    %v1896 = vpack.c.b16 %v1326, %v1320
    %v1897 = vpack.c.b16 %v1327, %v1321
    %v1898 = vpack.c.b16 %v1328, %v1322
    %v1899 = vpack.c.b16 %v1329, %v1323
    %v1900 = vpack.c.b16 %v1336, %v1330
    %v1901 = vpack.c.b16 %v1337, %v1331
    %v1902 = vpack.c.b16 %v1338, %v1332
    %v1903 = vpack.c.b16 %v1339, %v1333
    %v1904 = vpack.c.b16 %v1340, %v1334
    %v1905 = vpack.c.b16 %v1341, %v1335
    %v1906 = vpack.c.b16 %v1348, %v1342
    %v1907 = vpack.c.b16 %v1349, %v1343
    %v1908 = vpack.c.b16 %v1350, %v1344
    %v1909 = vpack.c.b16 %v1351, %v1345
    %v1910 = vpack.c.b16 %v1352, %v1346
    %v1911 = vpack.c.b16 %v1353, %v1347
    %v1912 = vpack.c.b16 %v1360, %v1354
    %v1913 = vpack.c.b16 %v1361, %v1355
    %v1914 = vpack.c.b16 %v1362, %v1356
    %v1915 = vpack.c.b16 %v1363, %v1357
    %v1916 = vpack.c.b16 %v1364, %v1358
    %v1917 = vpack.c.b16 %v1365, %v1359
    %v1918 = vpack.c.b16 %v1372, %v1366
    %v1919 = vpack.c.b16 %v1373, %v1367
    %v1920 = vpack.c.b16 %v1374, %v1368
    %v1921 = vpack.c.b16 %v1375, %v1369
    %v1922 = vpack.c.b16 %v1376, %v1370
    %v1923 = vpack.c.b16 %v1377, %v1371
    %v1924 = vpack.c.b16 %v1384, %v1378
    %v1925 = vpack.c.b16 %v1385, %v1379
    %v1926 = vpack.c.b16 %v1386, %v1380
    %v1927 = vpack.c.b16 %v1387, %v1381
    %v1928 = vpack.c.b16 %v1388, %v1382
    %v1929 = vpack.c.b16 %v1389, %v1383
    %v1930 = vpack.c.b16 %v1396, %v1390
    %v1931 = vpack.c.b16 %v1397, %v1391
    %v1932 = vpack.c.b16 %v1398, %v1392
    %v1933 = vpack.c.b16 %v1399, %v1393
    %v1934 = vpack.c.b16 %v1400, %v1394
    %v1935 = vpack.c.b16 %v1401, %v1395
    %v1936 = vpack.c.b16 %v1408, %v1402
    %v1937 = vpack.c.b16 %v1409, %v1403
    %v1938 = vpack.c.b16 %v1410, %v1404
    %v1939 = vpack.c.b16 %v1411, %v1405
    %v1940 = vpack.c.b16 %v1412, %v1406
    %v1941 = vpack.c.b16 %v1413, %v1407
    %v1942 = vpack.c.b16 %v1420, %v1414
    %v1943 = vpack.c.b16 %v1421, %v1415
    %v1944 = vpack.c.b16 %v1422, %v1416
    %v1945 = vpack.c.b16 %v1423, %v1417
    %v1946 = vpack.c.b16 %v1424, %v1418
    %v1947 = vpack.c.b16 %v1425, %v1419
    %v1948 = vpack.c.b16 %v1432, %v1426
    %v1949 = vpack.c.b16 %v1433, %v1427
    %v1950 = vpack.c.b16 %v1434, %v1428
    %v1951 = vpack.c.b16 %v1435, %v1429
    %v1952 = vpack.c.b16 %v1436, %v1430
    %v1953 = vpack.c.b16 %v1437, %v1431
    %v1954 = vpack.c.b16 %v1444, %v1438
    %v1955 = vpack.c.b16 %v1445, %v1439
    %v1956 = vpack.c.b16 %v1446, %v1440
    %v1957 = vpack.c.b16 %v1447, %v1441
    %v1958 = vpack.c.b16 %v1448, %v1442
    %v1959 = vpack.c.b16 %v1449, %v1443
    %v1960 = vpack.c.b16 %v1456, %v1450
    %v1961 = vpack.c.b16 %v1457, %v1451
    %v1962 = vpack.c.b16 %v1458, %v1452
    %v1963 = vpack.c.b16 %v1459, %v1453
    %v1964 = vpack.c.b16 %v1460, %v1454
    %v1965 = vpack.c.b16 %v1461, %v1455
    %v1966 = vpack.c.b16 %v1468, %v1462
    %v1967 = vpack.c.b16 %v1469, %v1463
    %v1968 = vpack.c.b16 %v1470, %v1464
    %v1969 = vpack.c.b16 %v1471, %v1465
    %v1970 = vpack.c.b16 %v1472, %v1466
    %v1971 = vpack.c.b16 %v1473, %v1467
    %v1972 = vpack.c.b16 %v1480, %v1474
    %v1973 = vpack.c.b16 %v1481, %v1475
    %v1974 = vpack.c.b16 %v1482, %v1476
    %v1975 = vpack.c.b16 %v1483, %v1477
    %v1976 = vpack.c.b16 %v1484, %v1478
    %v1977 = vpack.c.b16 %v1485, %v1479
    %v1978 = vpack.c.b16 %v1492, %v1486
    %v1979 = vpack.c.b16 %v1493, %v1487
    %v1980 = vpack.c.b16 %v1494, %v1488
    %v1981 = vpack.c.b16 %v1495, %v1489
    %v1982 = vpack.c.b16 %v1496, %v1490
    %v1983 = vpack.c.b16 %v1497, %v1491
    %v1984 = vpack.c.b16 %v1504, %v1498
    %v1985 = vpack.c.b16 %v1505, %v1499
    %v1986 = vpack.c.b16 %v1506, %v1500
    %v1987 = vpack.c.b16 %v1507, %v1501
    %v1988 = vpack.c.b16 %v1508, %v1502
    %v1989 = vpack.c.b16 %v1509, %v1503
    %v1990 = vpack.c.b16 %v1516, %v1510
    %v1991 = vpack.c.b16 %v1517, %v1511
    %v1992 = vpack.c.b16 %v1518, %v1512
    %v1993 = vpack.c.b16 %v1519, %v1513
    %v1994 = vpack.c.b16 %v1520, %v1514
    %v1995 = vpack.c.b16 %v1521, %v1515
    %v1996 = vpack.c.b16 %v1528, %v1522
    %v1997 = vpack.c.b16 %v1529, %v1523
    %v1998 = vpack.c.b16 %v1530, %v1524
    %v1999 = vpack.c.b16 %v1531, %v1525
    %v2000 = vpack.c.b16 %v1532, %v1526
    %v2001 = vpack.c.b16 %v1533, %v1527
    %v2002 = vpack.c.b16 %v1540, %v1534
    %v2003 = vpack.c.b16 %v1541, %v1535
    %v2004 = vpack.c.b16 %v1542, %v1536
    %v2005 = vpack.c.b16 %v1543, %v1537
    %v2006 = vpack.c.b16 %v1544, %v1538
    %v2007 = vpack.c.b16 %v1545, %v1539
    %v2008 = vpack.c.b16 %v1552, %v1546
    %v2009 = vpack.c.b16 %v1553, %v1547
    %v2010 = vpack.c.b16 %v1554, %v1548
    %v2011 = vpack.c.b16 %v1555, %v1549
    %v2012 = vpack.c.b16 %v1556, %v1550
    %v2013 = vpack.c.b16 %v1557, %v1551
    %v2014 = vpack.c.b16 %v1564, %v1558
    %v2015 = vpack.c.b16 %v1565, %v1559
    %v2016 = vpack.c.b16 %v1566, %v1560
    %v2017 = vpack.c.b16 %v1567, %v1561
    %v2018 = vpack.c.b16 %v1568, %v1562
    %v2019 = vpack.c.b16 %v1569, %v1563
    %v2020 = vpack.c.b16 %v1576, %v1570
    %v2021 = vpack.c.b16 %v1577, %v1571
    %v2022 = vpack.c.b16 %v1578, %v1572
    %v2023 = vpack.c.b16 %v1579, %v1573
    %v2024 = vpack.c.b16 %v1580, %v1574
    %v2025 = vpack.c.b16 %v1581, %v1575
    %v2026 = vpack.c.b16 %v1588, %v1582
    %v2027 = vpack.c.b16 %v1589, %v1583
    %v2028 = vpack.c.b16 %v1590, %v1584
    %v2029 = vpack.c.b16 %v1591, %v1585
    %v2030 = vpack.c.b16 %v1592, %v1586
    %v2031 = vpack.c.b16 %v1593, %v1587
    %v2032 = vpack.c.b16 %v1600, %v1594
    %v2033 = vpack.c.b16 %v1601, %v1595
    %v2034 = vpack.c.b16 %v1602, %v1596
    %v2035 = vpack.c.b16 %v1603, %v1597
    %v2036 = vpack.c.b16 %v1604, %v1598
    %v2037 = vpack.c.b16 %v1605, %v1599
    %v2038 = vpack.c.b16 %v1612, %v1606
    %v2039 = vpack.c.b16 %v1613, %v1607
    %v2040 = vpack.c.b16 %v1614, %v1608
    %v2041 = vpack.c.b16 %v1615, %v1609
    %v2042 = vpack.c.b16 %v1616, %v1610
    %v2043 = vpack.c.b16 %v1617, %v1611
    %v2044 = vpack.c.b16 %v1624, %v1618
    %v2045 = vpack.c.b16 %v1625, %v1619
    %v2046 = vpack.c.b16 %v1626, %v1620
    %v2047 = vpack.c.b16 %v1627, %v1621
    %v2048 = vpack.c.b16 %v1628, %v1622
    %v2049 = vpack.c.b16 %v1629, %v1623
    %v2050 = vpack.c.b16 %v1636, %v1630
    %v2051 = vpack.c.b16 %v1637, %v1631
    %v2052 = vpack.c.b16 %v1638, %v1632
    %v2053 = vpack.c.b16 %v1639, %v1633
    %v2054 = vpack.c.b16 %v1640, %v1634
    %v2055 = vpack.c.b16 %v1641, %v1635
    %v2056 = vpack.c.b16 %v1648, %v1642
    %v2057 = vpack.c.b16 %v1649, %v1643
    %v2058 = vpack.c.b16 %v1650, %v1644
    %v2059 = vpack.c.b16 %v1651, %v1645
    %v2060 = vpack.c.b16 %v1652, %v1646
    %v2061 = vpack.c.b16 %v1653, %v1647
    %v2062 = vpack.c.b16 %v1660, %v1654
    %v2063 = vpack.c.b16 %v1661, %v1655
    %v2064 = vpack.c.b16 %v1662, %v1656
    %v2065 = vpack.c.b16 %v1663, %v1657
    %v2066 = vpack.c.b16 %v1664, %v1658
    %v2067 = vpack.c.b16 %v1665, %v1659
    %v2068 = vpack.c.b16 %v1672, %v1666
    %v2069 = vpack.c.b16 %v1673, %v1667
    %v2070 = vpack.c.b16 %v1674, %v1668
    %v2071 = vpack.c.b16 %v1675, %v1669
    %v2072 = vpack.c.b16 %v1676, %v1670
    %v2073 = vpack.c.b16 %v1677, %v1671
    %v2074 = vpack.c.b16 %v1684, %v1678
    %v2075 = vpack.c.b16 %v1685, %v1679
    %v2076 = vpack.c.b16 %v1686, %v1680
    %v2077 = vpack.c.b16 %v1687, %v1681
    %v2078 = vpack.c.b16 %v1688, %v1682
    %v2079 = vpack.c.b16 %v1689, %v1683
    %v2080 = vpack.c.b16 %v1696, %v1690
    %v2081 = vpack.c.b16 %v1697, %v1691
    %v2082 = vpack.c.b16 %v1698, %v1692
    %v2083 = vpack.c.b16 %v1699, %v1693
    %v2084 = vpack.c.b16 %v1700, %v1694
    %v2085 = vpack.c.b16 %v1701, %v1695
    %v2086 = vpack.c.b16 %v1708, %v1702
    %v2087 = vpack.c.b16 %v1709, %v1703
    %v2088 = vpack.c.b16 %v1710, %v1704
    %v2089 = vpack.c.b16 %v1711, %v1705
    %v2090 = vpack.c.b16 %v1712, %v1706
    %v2091 = vpack.c.b16 %v1713, %v1707
    %v2092 = vpack.c.b16 %v1720, %v1714
    %v2093 = vpack.c.b16 %v1721, %v1715
    %v2094 = vpack.c.b16 %v1722, %v1716
    %v2095 = vpack.c.b16 %v1723, %v1717
    %v2096 = vpack.c.b16 %v1724, %v1718
    %v2097 = vpack.c.b16 %v1725, %v1719
    %v2098 = vpack.c.b16 %v1732, %v1726
    %v2099 = vpack.c.b16 %v1733, %v1727
    %v2100 = vpack.c.b16 %v1734, %v1728
    %v2101 = vpack.c.b16 %v1735, %v1729
    %v2102 = vpack.c.b16 %v1736, %v1730
    %v2103 = vpack.c.b16 %v1737, %v1731
    %v2104 = vpack.c.b16 %v1744, %v1738
    %v2105 = vpack.c.b16 %v1745, %v1739
    %v2106 = vpack.c.b16 %v1746, %v1740
    %v2107 = vpack.c.b16 %v1747, %v1741
    %v2108 = vpack.c.b16 %v1748, %v1742
    %v2109 = vpack.c.b16 %v1749, %v1743
    %v2110 = vpack.c.b16 %v1756, %v1750
    %v2111 = vpack.c.b16 %v1757, %v1751
    %v2112 = vpack.c.b16 %v1758, %v1752
    %v2113 = vpack.c.b16 %v1759, %v1753
    %v2114 = vpack.c.b16 %v1760, %v1754
    %v2115 = vpack.c.b16 %v1761, %v1755
    %v2116 = vpack.c.b16 %v1768, %v1762
    %v2117 = vpack.c.b16 %v1769, %v1763
    %v2118 = vpack.c.b16 %v1770, %v1764
    %v2119 = vpack.c.b16 %v1771, %v1765
    %v2120 = vpack.c.b16 %v1772, %v1766
    %v2121 = vpack.c.b16 %v1773, %v1767
    %v2122 = vpack.c.b16 %v1780, %v1774
    %v2123 = vpack.c.b16 %v1781, %v1775
    %v2124 = vpack.c.b16 %v1782, %v1776
    %v2125 = vpack.c.b16 %v1783, %v1777
    %v2126 = vpack.c.b16 %v1784, %v1778
    %v2127 = vpack.c.b16 %v1785, %v1779
    %v2128 = vpack.c.b16 %v1792, %v1786
    %v2129 = vpack.c.b16 %v1793, %v1787
    %v2130 = vpack.c.b16 %v1794, %v1788
    %v2131 = vpack.c.b16 %v1795, %v1789
    %v2132 = vpack.c.b16 %v1796, %v1790
    %v2133 = vpack.c.b16 %v1797, %v1791
    %v2134 = vpack.c.b16 %v1804, %v1798
    %v2135 = vpack.c.b16 %v1805, %v1799
    %v2136 = vpack.c.b16 %v1806, %v1800
    %v2137 = vpack.c.b16 %v1807, %v1801
    %v2138 = vpack.c.b16 %v1808, %v1802
    %v2139 = vpack.c.b16 %v1809, %v1803
    %v2140 = vpack.c.b16 %v1816, %v1810
    %v2141 = vpack.c.b16 %v1817, %v1811
    %v2142 = vpack.c.b16 %v1818, %v1812
    %v2143 = vpack.c.b16 %v1819, %v1813
    %v2144 = vpack.c.b16 %v1820, %v1814
    %v2145 = vpack.c.b16 %v1821, %v1815
    %v2146 = vpack.c.b16 %v1828, %v1822
    %v2147 = vpack.c.b16 %v1829, %v1823
    %v2148 = vpack.c.b16 %v1830, %v1824
    %v2149 = vpack.c.b16 %v1831, %v1825
    %v2150 = vpack.c.b16 %v1832, %v1826
    %v2151 = vpack.c.b16 %v1833, %v1827
    %v2152 = vpack.c.b16 %v1840, %v1834
    %v2153 = vpack.c.b16 %v1841, %v1835
    %v2154 = vpack.c.b16 %v1842, %v1836
    %v2155 = vpack.c.b16 %v1843, %v1837
    %v2156 = vpack.c.b16 %v1844, %v1838
    %v2157 = vpack.c.b16 %v1845, %v1839
    %v2158 = vpack.c.b16 %v1852, %v1846
    %v2159 = vpack.c.b16 %v1853, %v1847
    %v2160 = vpack.c.b16 %v1854, %v1848
    %v2161 = vpack.c.b16 %v1855, %v1849
    %v2162 = vpack.c.b16 %v1856, %v1850
    %v2163 = vpack.c.b16 %v1857, %v1851
    %v2164 = vpack.c.b16 %v1864, %v1858
    %v2165 = vpack.c.b16 %v1865, %v1859
    %v2166 = vpack.c.b16 %v1866, %v1860
    %v2167 = vpack.c.b16 %v1867, %v1861
    %v2168 = vpack.c.b16 %v1868, %v1862
    %v2169 = vpack.c.b16 %v1869, %v1863
    %v2170 = vpack.c.b16 %v1876, %v1870
    %v2171 = vpack.c.b16 %v1877, %v1871
    %v2172 = vpack.c.b16 %v1878, %v1872
    %v2173 = vpack.c.b16 %v1879, %v1873
    %v2174 = vpack.c.b16 %v1880, %v1874
    %v2175 = vpack.c.b16 %v1881, %v1875
    %v2176 = vpack.c.b16 %v1888, %v1882
    %v2177 = vpack.c.b16 %v1889, %v1883
    %v2178 = vpack.c.b16 %v1890, %v1884
    %v2179 = vpack.c.b16 %v1891, %v1885
    %v2180 = vpack.c.b16 %v1892, %v1886
    %v2181 = vpack.c.b16 %v1893, %v1887
    %2470 = vmatpush.bf16.msra.mxu0 %v1936
    %2471 = vmatpush.bf16.msra.mxu0 %v1930
    %2472 = vmatpush.bf16.msra.mxu0 %v1924
    %2473 = vmatpush.bf16.msra.mxu0 %v1918
    %2474 = vmatpush.bf16.msra.mxu0 %v1912
    %2475 = vmatpush.bf16.msra.mxu0 %v1906
    %2476 = vmatpush.bf16.msra.mxu0 %v1900
    %2477 = vmatpush.bf16.msra.mxu0 %v1894
    %2478 = vmatmul.bf16.gmra.mxu0 %v723
    %v2479 = vpop.f32.mrf.mxu0
    %v2480 = vadd.f32 %v1018, %v2479
    %v2481 = vpop.f32.mrf.mxu0
    %2482 = vdwg.mxu0
    %2483 = vmatpush.bf16.msra.mxu0 %v1984
    %2484 = vmatpush.bf16.msra.mxu0 %v1978
    %2485 = vmatpush.bf16.msra.mxu0 %v1972
    %2486 = vmatpush.bf16.msra.mxu0 %v1966
    %2487 = vmatpush.bf16.msra.mxu0 %v1960
    %2488 = vmatpush.bf16.msra.mxu0 %v1954
    %2489 = vmatpush.bf16.msra.mxu0 %v1948
    %2490 = vmatpush.bf16.msra.mxu0 %v1942
    %2491 = vmatmul.bf16.gmra.mxu0 %v724
    %v2492 = vpop.f32.mrf.mxu0
    %v2493 = vadd.f32 %v2480, %v2492
    %v2494 = vpop.f32.mrf.mxu0
    %2495 = vdwg.mxu0
    %2496 = vmatpush.bf16.msra.mxu0 %v2032
    %2497 = vmatpush.bf16.msra.mxu0 %v2026
    %2498 = vmatpush.bf16.msra.mxu0 %v2020
    %2499 = vmatpush.bf16.msra.mxu0 %v2014
    %2500 = vmatpush.bf16.msra.mxu0 %v2008
    %2501 = vmatpush.bf16.msra.mxu0 %v2002
    %2502 = vmatpush.bf16.msra.mxu0 %v1996
    %2503 = vmatpush.bf16.msra.mxu0 %v1990
    %2504 = vmatmul.bf16.gmra.mxu0 %v725
    %v2505 = vpop.f32.mrf.mxu0
    %v2506 = vadd.f32 %v2493, %v2505
    %v2507 = vpop.f32.mrf.mxu0
    %2508 = vdwg.mxu0
    %2509 = vmatpush.bf16.msra.mxu0 %v2080
    %2510 = vmatpush.bf16.msra.mxu0 %v2074
    %2511 = vmatpush.bf16.msra.mxu0 %v2068
    %2512 = vmatpush.bf16.msra.mxu0 %v2062
    %2513 = vmatpush.bf16.msra.mxu0 %v2056
    %2514 = vmatpush.bf16.msra.mxu0 %v2050
    %2515 = vmatpush.bf16.msra.mxu0 %v2044
    %2516 = vmatpush.bf16.msra.mxu0 %v2038
    %2517 = vmatmul.bf16.gmra.mxu0 %v726
    %v2518 = vpop.f32.mrf.mxu0
    %v2519 = vadd.f32 %v2506, %v2518
    %v2520 = vpop.f32.mrf.mxu0
    %2521 = vdwg.mxu0
    %2522 = vmatpush.bf16.msra.mxu0 %v2128
    %2523 = vmatpush.bf16.msra.mxu0 %v2122
    %2524 = vmatpush.bf16.msra.mxu0 %v2116
    %2525 = vmatpush.bf16.msra.mxu0 %v2110
    %2526 = vmatpush.bf16.msra.mxu0 %v2104
    %2527 = vmatpush.bf16.msra.mxu0 %v2098
    %2528 = vmatpush.bf16.msra.mxu0 %v2092
    %2529 = vmatpush.bf16.msra.mxu0 %v2086
    %2530 = vmatmul.bf16.gmra.mxu0 %v727
    %v2531 = vpop.f32.mrf.mxu0
    %v2532 = vadd.f32 %v2519, %v2531
    %v2533 = vpop.f32.mrf.mxu0
    %2534 = vdwg.mxu0
    %2535 = vmatpush.bf16.msra.mxu0 %v2176
    %2536 = vmatpush.bf16.msra.mxu0 %v2170
    %2537 = vmatpush.bf16.msra.mxu0 %v2164
    %2538 = vmatpush.bf16.msra.mxu0 %v2158
    %2539 = vmatpush.bf16.msra.mxu0 %v2152
    %2540 = vmatpush.bf16.msra.mxu0 %v2146
    %2541 = vmatpush.bf16.msra.mxu0 %v2140
    %2542 = vmatpush.bf16.msra.mxu0 %v2134
    %2543 = vmatmul.bf16.gmra.mxu0 %v728
    %v2544 = vpop.f32.mrf.mxu0
    %v2545 = vadd.f32 %v2532, %v2544
    %v2546 = vpop.f32.mrf.mxu0
    %2547 = vdwg.mxu0
    %2548 = vmatpush.bf16.msra.mxu0 %v1937
    %2549 = vmatpush.bf16.msra.mxu0 %v1931
    %2550 = vmatpush.bf16.msra.mxu0 %v1925
    %2551 = vmatpush.bf16.msra.mxu0 %v1919
    %2552 = vmatpush.bf16.msra.mxu0 %v1913
    %2553 = vmatpush.bf16.msra.mxu0 %v1907
    %2554 = vmatpush.bf16.msra.mxu0 %v1901
    %2555 = vmatpush.bf16.msra.mxu0 %v1895
    %2556 = vmatmul.bf16.gmra.mxu0 %v723
    %v2557 = vpop.f32.mrf.mxu0
    %v2558 = vadd.f32 %v1019, %v2557
    %v2559 = vpop.f32.mrf.mxu0
    %2560 = vdwg.mxu0
    %2561 = vmatpush.bf16.msra.mxu0 %v1985
    %2562 = vmatpush.bf16.msra.mxu0 %v1979
    %2563 = vmatpush.bf16.msra.mxu0 %v1973
    %2564 = vmatpush.bf16.msra.mxu0 %v1967
    %2565 = vmatpush.bf16.msra.mxu0 %v1961
    %2566 = vmatpush.bf16.msra.mxu0 %v1955
    %2567 = vmatpush.bf16.msra.mxu0 %v1949
    %2568 = vmatpush.bf16.msra.mxu0 %v1943
    %2569 = vmatmul.bf16.gmra.mxu0 %v724
    %v2570 = vpop.f32.mrf.mxu0
    %v2571 = vadd.f32 %v2558, %v2570
    %v2572 = vpop.f32.mrf.mxu0
    %2573 = vdwg.mxu0
    %2574 = vmatpush.bf16.msra.mxu0 %v2033
    %2575 = vmatpush.bf16.msra.mxu0 %v2027
    %2576 = vmatpush.bf16.msra.mxu0 %v2021
    %2577 = vmatpush.bf16.msra.mxu0 %v2015
    %2578 = vmatpush.bf16.msra.mxu0 %v2009
    %2579 = vmatpush.bf16.msra.mxu0 %v2003
    %2580 = vmatpush.bf16.msra.mxu0 %v1997
    %2581 = vmatpush.bf16.msra.mxu0 %v1991
    %2582 = vmatmul.bf16.gmra.mxu0 %v725
    %v2583 = vpop.f32.mrf.mxu0
    %v2584 = vadd.f32 %v2571, %v2583
    %v2585 = vpop.f32.mrf.mxu0
    %2586 = vdwg.mxu0
    %2587 = vmatpush.bf16.msra.mxu0 %v2081
    %2588 = vmatpush.bf16.msra.mxu0 %v2075
    %2589 = vmatpush.bf16.msra.mxu0 %v2069
    %2590 = vmatpush.bf16.msra.mxu0 %v2063
    %2591 = vmatpush.bf16.msra.mxu0 %v2057
    %2592 = vmatpush.bf16.msra.mxu0 %v2051
    %2593 = vmatpush.bf16.msra.mxu0 %v2045
    %2594 = vmatpush.bf16.msra.mxu0 %v2039
    %2595 = vmatmul.bf16.gmra.mxu0 %v726
    %v2596 = vpop.f32.mrf.mxu0
    %v2597 = vadd.f32 %v2584, %v2596
    %v2598 = vpop.f32.mrf.mxu0
    %2599 = vdwg.mxu0
    %2600 = vmatpush.bf16.msra.mxu0 %v2129
    %2601 = vmatpush.bf16.msra.mxu0 %v2123
    %2602 = vmatpush.bf16.msra.mxu0 %v2117
    %2603 = vmatpush.bf16.msra.mxu0 %v2111
    %2604 = vmatpush.bf16.msra.mxu0 %v2105
    %2605 = vmatpush.bf16.msra.mxu0 %v2099
    %2606 = vmatpush.bf16.msra.mxu0 %v2093
    %2607 = vmatpush.bf16.msra.mxu0 %v2087
    %2608 = vmatmul.bf16.gmra.mxu0 %v727
    %v2609 = vpop.f32.mrf.mxu0
    %v2610 = vadd.f32 %v2597, %v2609
    %v2611 = vpop.f32.mrf.mxu0
    %2612 = vdwg.mxu0
    %2613 = vmatpush.bf16.msra.mxu0 %v2177
    %2614 = vmatpush.bf16.msra.mxu0 %v2171
    %2615 = vmatpush.bf16.msra.mxu0 %v2165
    %2616 = vmatpush.bf16.msra.mxu0 %v2159
    %2617 = vmatpush.bf16.msra.mxu0 %v2153
    %2618 = vmatpush.bf16.msra.mxu0 %v2147
    %2619 = vmatpush.bf16.msra.mxu0 %v2141
    %2620 = vmatpush.bf16.msra.mxu0 %v2135
    %2621 = vmatmul.bf16.gmra.mxu0 %v728
    %v2622 = vpop.f32.mrf.mxu0
    %v2623 = vadd.f32 %v2610, %v2622
    %v2624 = vpop.f32.mrf.mxu0
    %2625 = vdwg.mxu0
    %2626 = vmatpush.bf16.msra.mxu0 %v1938
    %2627 = vmatpush.bf16.msra.mxu0 %v1932
    %2628 = vmatpush.bf16.msra.mxu0 %v1926
    %2629 = vmatpush.bf16.msra.mxu0 %v1920
    %2630 = vmatpush.bf16.msra.mxu0 %v1914
    %2631 = vmatpush.bf16.msra.mxu0 %v1908
    %2632 = vmatpush.bf16.msra.mxu0 %v1902
    %2633 = vmatpush.bf16.msra.mxu0 %v1896
    %2634 = vmatmul.bf16.gmra.mxu0 %v723
    %v2635 = vpop.f32.mrf.mxu0
    %v2636 = vadd.f32 %v1020, %v2635
    %v2637 = vpop.f32.mrf.mxu0
    %2638 = vdwg.mxu0
    %2639 = vmatpush.bf16.msra.mxu0 %v1986
    %2640 = vmatpush.bf16.msra.mxu0 %v1980
    %2641 = vmatpush.bf16.msra.mxu0 %v1974
    %2642 = vmatpush.bf16.msra.mxu0 %v1968
    %2643 = vmatpush.bf16.msra.mxu0 %v1962
    %2644 = vmatpush.bf16.msra.mxu0 %v1956
    %2645 = vmatpush.bf16.msra.mxu0 %v1950
    %2646 = vmatpush.bf16.msra.mxu0 %v1944
    %2647 = vmatmul.bf16.gmra.mxu0 %v724
    %v2648 = vpop.f32.mrf.mxu0
    %v2649 = vadd.f32 %v2636, %v2648
    %v2650 = vpop.f32.mrf.mxu0
    %2651 = vdwg.mxu0
    %2652 = vmatpush.bf16.msra.mxu0 %v2034
    %2653 = vmatpush.bf16.msra.mxu0 %v2028
    %2654 = vmatpush.bf16.msra.mxu0 %v2022
    %2655 = vmatpush.bf16.msra.mxu0 %v2016
    %2656 = vmatpush.bf16.msra.mxu0 %v2010
    %2657 = vmatpush.bf16.msra.mxu0 %v2004
    %2658 = vmatpush.bf16.msra.mxu0 %v1998
    %2659 = vmatpush.bf16.msra.mxu0 %v1992
    %2660 = vmatmul.bf16.gmra.mxu0 %v725
    %v2661 = vpop.f32.mrf.mxu0
    %v2662 = vadd.f32 %v2649, %v2661
    %v2663 = vpop.f32.mrf.mxu0
    %2664 = vdwg.mxu0
    %2665 = vmatpush.bf16.msra.mxu0 %v2082
    %2666 = vmatpush.bf16.msra.mxu0 %v2076
    %2667 = vmatpush.bf16.msra.mxu0 %v2070
    %2668 = vmatpush.bf16.msra.mxu0 %v2064
    %2669 = vmatpush.bf16.msra.mxu0 %v2058
    %2670 = vmatpush.bf16.msra.mxu0 %v2052
    %2671 = vmatpush.bf16.msra.mxu0 %v2046
    %2672 = vmatpush.bf16.msra.mxu0 %v2040
    %2673 = vmatmul.bf16.gmra.mxu0 %v726
    %v2674 = vpop.f32.mrf.mxu0
    %v2675 = vadd.f32 %v2662, %v2674
    %v2676 = vpop.f32.mrf.mxu0
    %2677 = vdwg.mxu0
    %2678 = vmatpush.bf16.msra.mxu0 %v2130
    %2679 = vmatpush.bf16.msra.mxu0 %v2124
    %2680 = vmatpush.bf16.msra.mxu0 %v2118
    %2681 = vmatpush.bf16.msra.mxu0 %v2112
    %2682 = vmatpush.bf16.msra.mxu0 %v2106
    %2683 = vmatpush.bf16.msra.mxu0 %v2100
    %2684 = vmatpush.bf16.msra.mxu0 %v2094
    %2685 = vmatpush.bf16.msra.mxu0 %v2088
    %2686 = vmatmul.bf16.gmra.mxu0 %v727
    %v2687 = vpop.f32.mrf.mxu0
    %v2688 = vadd.f32 %v2675, %v2687
    %v2689 = vpop.f32.mrf.mxu0
    %2690 = vdwg.mxu0
    %2691 = vmatpush.bf16.msra.mxu0 %v2178
    %2692 = vmatpush.bf16.msra.mxu0 %v2172
    %2693 = vmatpush.bf16.msra.mxu0 %v2166
    %2694 = vmatpush.bf16.msra.mxu0 %v2160
    %2695 = vmatpush.bf16.msra.mxu0 %v2154
    %2696 = vmatpush.bf16.msra.mxu0 %v2148
    %2697 = vmatpush.bf16.msra.mxu0 %v2142
    %2698 = vmatpush.bf16.msra.mxu0 %v2136
    %2699 = vmatmul.bf16.gmra.mxu0 %v728
    %v2700 = vpop.f32.mrf.mxu0
    %v2701 = vadd.f32 %v2688, %v2700
    %v2702 = vpop.f32.mrf.mxu0
    %2703 = vdwg.mxu0
    %2704 = vmatpush.bf16.msra.mxu0 %v1939
    %2705 = vmatpush.bf16.msra.mxu0 %v1933
    %2706 = vmatpush.bf16.msra.mxu0 %v1927
    %2707 = vmatpush.bf16.msra.mxu0 %v1921
    %2708 = vmatpush.bf16.msra.mxu0 %v1915
    %2709 = vmatpush.bf16.msra.mxu0 %v1909
    %2710 = vmatpush.bf16.msra.mxu0 %v1903
    %2711 = vmatpush.bf16.msra.mxu0 %v1897
    %2712 = vmatmul.bf16.gmra.mxu0 %v723
    %v2713 = vpop.f32.mrf.mxu0
    %v2714 = vadd.f32 %v1021, %v2713
    %v2715 = vpop.f32.mrf.mxu0
    %2716 = vdwg.mxu0
    %2717 = vmatpush.bf16.msra.mxu0 %v1987
    %2718 = vmatpush.bf16.msra.mxu0 %v1981
    %2719 = vmatpush.bf16.msra.mxu0 %v1975
    %2720 = vmatpush.bf16.msra.mxu0 %v1969
    %2721 = vmatpush.bf16.msra.mxu0 %v1963
    %2722 = vmatpush.bf16.msra.mxu0 %v1957
    %2723 = vmatpush.bf16.msra.mxu0 %v1951
    %2724 = vmatpush.bf16.msra.mxu0 %v1945
    %2725 = vmatmul.bf16.gmra.mxu0 %v724
    %v2726 = vpop.f32.mrf.mxu0
    %v2727 = vadd.f32 %v2714, %v2726
    %v2728 = vpop.f32.mrf.mxu0
    %2729 = vdwg.mxu0
    %2730 = vmatpush.bf16.msra.mxu0 %v2035
    %2731 = vmatpush.bf16.msra.mxu0 %v2029
    %2732 = vmatpush.bf16.msra.mxu0 %v2023
    %2733 = vmatpush.bf16.msra.mxu0 %v2017
    %2734 = vmatpush.bf16.msra.mxu0 %v2011
    %2735 = vmatpush.bf16.msra.mxu0 %v2005
    %2736 = vmatpush.bf16.msra.mxu0 %v1999
    %2737 = vmatpush.bf16.msra.mxu0 %v1993
    %2738 = vmatmul.bf16.gmra.mxu0 %v725
    %v2739 = vpop.f32.mrf.mxu0
    %v2740 = vadd.f32 %v2727, %v2739
    %v2741 = vpop.f32.mrf.mxu0
    %2742 = vdwg.mxu0
    %2743 = vmatpush.bf16.msra.mxu0 %v2083
    %2744 = vmatpush.bf16.msra.mxu0 %v2077
    %2745 = vmatpush.bf16.msra.mxu0 %v2071
    %2746 = vmatpush.bf16.msra.mxu0 %v2065
    %2747 = vmatpush.bf16.msra.mxu0 %v2059
    %2748 = vmatpush.bf16.msra.mxu0 %v2053
    %2749 = vmatpush.bf16.msra.mxu0 %v2047
    %2750 = vmatpush.bf16.msra.mxu0 %v2041
    %2751 = vmatmul.bf16.gmra.mxu0 %v726
    %v2752 = vpop.f32.mrf.mxu0
    %v2753 = vadd.f32 %v2740, %v2752
    %v2754 = vpop.f32.mrf.mxu0
    %2755 = vdwg.mxu0
    %2756 = vmatpush.bf16.msra.mxu0 %v2131
    %2757 = vmatpush.bf16.msra.mxu0 %v2125
    %2758 = vmatpush.bf16.msra.mxu0 %v2119
    %2759 = vmatpush.bf16.msra.mxu0 %v2113
    %2760 = vmatpush.bf16.msra.mxu0 %v2107
    %2761 = vmatpush.bf16.msra.mxu0 %v2101
    %2762 = vmatpush.bf16.msra.mxu0 %v2095
    %2763 = vmatpush.bf16.msra.mxu0 %v2089
    %2764 = vmatmul.bf16.gmra.mxu0 %v727
    %v2765 = vpop.f32.mrf.mxu0
    %v2766 = vadd.f32 %v2753, %v2765
    %v2767 = vpop.f32.mrf.mxu0
    %2768 = vdwg.mxu0
    %2769 = vmatpush.bf16.msra.mxu0 %v2179
    %2770 = vmatpush.bf16.msra.mxu0 %v2173
    %2771 = vmatpush.bf16.msra.mxu0 %v2167
    %2772 = vmatpush.bf16.msra.mxu0 %v2161
    %2773 = vmatpush.bf16.msra.mxu0 %v2155
    %2774 = vmatpush.bf16.msra.mxu0 %v2149
    %2775 = vmatpush.bf16.msra.mxu0 %v2143
    %2776 = vmatpush.bf16.msra.mxu0 %v2137
    %2777 = vmatmul.bf16.gmra.mxu0 %v728
    %v2778 = vpop.f32.mrf.mxu0
    %v2779 = vadd.f32 %v2766, %v2778
    %v2780 = vpop.f32.mrf.mxu0
    %2781 = vdwg.mxu0
    %2782 = vmatpush.bf16.msra.mxu0 %v1940
    %2783 = vmatpush.bf16.msra.mxu0 %v1934
    %2784 = vmatpush.bf16.msra.mxu0 %v1928
    %2785 = vmatpush.bf16.msra.mxu0 %v1922
    %2786 = vmatpush.bf16.msra.mxu0 %v1916
    %2787 = vmatpush.bf16.msra.mxu0 %v1910
    %2788 = vmatpush.bf16.msra.mxu0 %v1904
    %2789 = vmatpush.bf16.msra.mxu0 %v1898
    %2790 = vmatmul.bf16.gmra.mxu0 %v723
    %v2791 = vpop.f32.mrf.mxu0
    %v2792 = vadd.f32 %v1022, %v2791
    %v2793 = vpop.f32.mrf.mxu0
    %2794 = vdwg.mxu0
    %2795 = vmatpush.bf16.msra.mxu0 %v1988
    %2796 = vmatpush.bf16.msra.mxu0 %v1982
    %2797 = vmatpush.bf16.msra.mxu0 %v1976
    %2798 = vmatpush.bf16.msra.mxu0 %v1970
    %2799 = vmatpush.bf16.msra.mxu0 %v1964
    %2800 = vmatpush.bf16.msra.mxu0 %v1958
    %2801 = vmatpush.bf16.msra.mxu0 %v1952
    %2802 = vmatpush.bf16.msra.mxu0 %v1946
    %2803 = vmatmul.bf16.gmra.mxu0 %v724
    %v2804 = vpop.f32.mrf.mxu0
    %v2805 = vadd.f32 %v2792, %v2804
    %v2806 = vpop.f32.mrf.mxu0
    %2807 = vdwg.mxu0
    %2808 = vmatpush.bf16.msra.mxu0 %v2036
    %2809 = vmatpush.bf16.msra.mxu0 %v2030
    %2810 = vmatpush.bf16.msra.mxu0 %v2024
    %2811 = vmatpush.bf16.msra.mxu0 %v2018
    %2812 = vmatpush.bf16.msra.mxu0 %v2012
    %2813 = vmatpush.bf16.msra.mxu0 %v2006
    %2814 = vmatpush.bf16.msra.mxu0 %v2000
    %2815 = vmatpush.bf16.msra.mxu0 %v1994
    %2816 = vmatmul.bf16.gmra.mxu0 %v725
    %v2817 = vpop.f32.mrf.mxu0
    %v2818 = vadd.f32 %v2805, %v2817
    %v2819 = vpop.f32.mrf.mxu0
    %2820 = vdwg.mxu0
    %2821 = vmatpush.bf16.msra.mxu0 %v2084
    %2822 = vmatpush.bf16.msra.mxu0 %v2078
    %2823 = vmatpush.bf16.msra.mxu0 %v2072
    %2824 = vmatpush.bf16.msra.mxu0 %v2066
    %2825 = vmatpush.bf16.msra.mxu0 %v2060
    %2826 = vmatpush.bf16.msra.mxu0 %v2054
    %2827 = vmatpush.bf16.msra.mxu0 %v2048
    %2828 = vmatpush.bf16.msra.mxu0 %v2042
    %2829 = vmatmul.bf16.gmra.mxu0 %v726
    %v2830 = vpop.f32.mrf.mxu0
    %v2831 = vadd.f32 %v2818, %v2830
    %v2832 = vpop.f32.mrf.mxu0
    %2833 = vdwg.mxu0
    %2834 = vmatpush.bf16.msra.mxu0 %v2132
    %2835 = vmatpush.bf16.msra.mxu0 %v2126
    %2836 = vmatpush.bf16.msra.mxu0 %v2120
    %2837 = vmatpush.bf16.msra.mxu0 %v2114
    %2838 = vmatpush.bf16.msra.mxu0 %v2108
    %2839 = vmatpush.bf16.msra.mxu0 %v2102
    %2840 = vmatpush.bf16.msra.mxu0 %v2096
    %2841 = vmatpush.bf16.msra.mxu0 %v2090
    %2842 = vmatmul.bf16.gmra.mxu0 %v727
    %v2843 = vpop.f32.mrf.mxu0
    %v2844 = vadd.f32 %v2831, %v2843
    %v2845 = vpop.f32.mrf.mxu0
    %2846 = vdwg.mxu0
    %2847 = vmatpush.bf16.msra.mxu0 %v2180
    %2848 = vmatpush.bf16.msra.mxu0 %v2174
    %2849 = vmatpush.bf16.msra.mxu0 %v2168
    %2850 = vmatpush.bf16.msra.mxu0 %v2162
    %2851 = vmatpush.bf16.msra.mxu0 %v2156
    %2852 = vmatpush.bf16.msra.mxu0 %v2150
    %2853 = vmatpush.bf16.msra.mxu0 %v2144
    %2854 = vmatpush.bf16.msra.mxu0 %v2138
    %2855 = vmatmul.bf16.gmra.mxu0 %v728
    %v2856 = vpop.f32.mrf.mxu0
    %v2857 = vadd.f32 %v2844, %v2856
    %v2858 = vpop.f32.mrf.mxu0
    %2859 = vdwg.mxu0
    %2860 = vmatpush.bf16.msra.mxu0 %v1941
    %2861 = vmatpush.bf16.msra.mxu0 %v1935
    %2862 = vmatpush.bf16.msra.mxu0 %v1929
    %2863 = vmatpush.bf16.msra.mxu0 %v1923
    %2864 = vmatpush.bf16.msra.mxu0 %v1917
    %2865 = vmatpush.bf16.msra.mxu0 %v1911
    %2866 = vmatpush.bf16.msra.mxu0 %v1905
    %2867 = vmatpush.bf16.msra.mxu0 %v1899
    %2868 = vmatmul.bf16.gmra.mxu0 %v723
    %v2869 = vpop.f32.mrf.mxu0
    %v2870 = vadd.f32 %v1023, %v2869
    %v2871 = vpop.f32.mrf.mxu0
    %2872 = vdwg.mxu0
    %2873 = vmatpush.bf16.msra.mxu0 %v1989
    %2874 = vmatpush.bf16.msra.mxu0 %v1983
    %2875 = vmatpush.bf16.msra.mxu0 %v1977
    %2876 = vmatpush.bf16.msra.mxu0 %v1971
    %2877 = vmatpush.bf16.msra.mxu0 %v1965
    %2878 = vmatpush.bf16.msra.mxu0 %v1959
    %2879 = vmatpush.bf16.msra.mxu0 %v1953
    %2880 = vmatpush.bf16.msra.mxu0 %v1947
    %2881 = vmatmul.bf16.gmra.mxu0 %v724
    %v2882 = vpop.f32.mrf.mxu0
    %v2883 = vadd.f32 %v2870, %v2882
    %v2884 = vpop.f32.mrf.mxu0
    %2885 = vdwg.mxu0
    %2886 = vmatpush.bf16.msra.mxu0 %v2037
    %2887 = vmatpush.bf16.msra.mxu0 %v2031
    %2888 = vmatpush.bf16.msra.mxu0 %v2025
    %2889 = vmatpush.bf16.msra.mxu0 %v2019
    %2890 = vmatpush.bf16.msra.mxu0 %v2013
    %2891 = vmatpush.bf16.msra.mxu0 %v2007
    %2892 = vmatpush.bf16.msra.mxu0 %v2001
    %2893 = vmatpush.bf16.msra.mxu0 %v1995
    %2894 = vmatmul.bf16.gmra.mxu0 %v725
    %v2895 = vpop.f32.mrf.mxu0
    %v2896 = vadd.f32 %v2883, %v2895
    %v2897 = vpop.f32.mrf.mxu0
    %2898 = vdwg.mxu0
    %2899 = vmatpush.bf16.msra.mxu0 %v2085
    %2900 = vmatpush.bf16.msra.mxu0 %v2079
    %2901 = vmatpush.bf16.msra.mxu0 %v2073
    %2902 = vmatpush.bf16.msra.mxu0 %v2067
    %2903 = vmatpush.bf16.msra.mxu0 %v2061
    %2904 = vmatpush.bf16.msra.mxu0 %v2055
    %2905 = vmatpush.bf16.msra.mxu0 %v2049
    %2906 = vmatpush.bf16.msra.mxu0 %v2043
    %2907 = vmatmul.bf16.gmra.mxu0 %v726
    %v2908 = vpop.f32.mrf.mxu0
    %v2909 = vadd.f32 %v2896, %v2908
    %v2910 = vpop.f32.mrf.mxu0
    %2911 = vdwg.mxu0
    %2912 = vmatpush.bf16.msra.mxu0 %v2133
    %2913 = vmatpush.bf16.msra.mxu0 %v2127
    %2914 = vmatpush.bf16.msra.mxu0 %v2121
    %2915 = vmatpush.bf16.msra.mxu0 %v2115
    %2916 = vmatpush.bf16.msra.mxu0 %v2109
    %2917 = vmatpush.bf16.msra.mxu0 %v2103
    %2918 = vmatpush.bf16.msra.mxu0 %v2097
    %2919 = vmatpush.bf16.msra.mxu0 %v2091
    %2920 = vmatmul.bf16.gmra.mxu0 %v727
    %v2921 = vpop.f32.mrf.mxu0
    %v2922 = vadd.f32 %v2909, %v2921
    %v2923 = vpop.f32.mrf.mxu0
    %2924 = vdwg.mxu0
    %2925 = vmatpush.bf16.msra.mxu0 %v2181
    %2926 = vmatpush.bf16.msra.mxu0 %v2175
    %2927 = vmatpush.bf16.msra.mxu0 %v2169
    %2928 = vmatpush.bf16.msra.mxu0 %v2163
    %2929 = vmatpush.bf16.msra.mxu0 %v2157
    %2930 = vmatpush.bf16.msra.mxu0 %v2151
    %2931 = vmatpush.bf16.msra.mxu0 %v2145
    %2932 = vmatpush.bf16.msra.mxu0 %v2139
    %2933 = vmatmul.bf16.gmra.mxu0 %v728
    %v2934 = vpop.f32.mrf.mxu0
    %v2935 = vadd.f32 %v2922, %v2934
    %v2936 = vpop.f32.mrf.mxu0
    %2937 = vdwg.mxu0
    %v2938 = vtanh.pop %v2545
    %v2939 = vtanh.pop %v2623
    %v2940 = vtanh.pop %v2701
    %v2941 = vtanh.pop %v2779
    %v2942 = vtanh.pop %v2857
    %v2943 = vtanh.pop %v2935
    %v2944 = vpack.c.bf16 %v2938, %v2938
    %v2945 = vpack.c.bf16 %v2939, %v2939
    %v2946 = vpack.c.bf16 %v2940, %v2940
    %v2947 = vpack.c.bf16 %v2941, %v2941
    %v2948 = vpack.c.bf16 %v2942, %v2942
    %v2949 = vpack.c.bf16 %v2943, %v2943
    %v2950 = vld [vmem:[#allocation10] sm:$0xff]
    %v2951 = vld [vmem:[#allocation10 + $0x8] sm:$0xff]
    %v2952 = vld [vmem:[#allocation10 + $0x10] sm:$0xff]
    %v2956 = vunpack.c.l.b16 %v2950
    %v2957 = vunpack.c.h.b16 %v2950
    %v2958 = vunpack.c.l.b16 %v2951
    %v2959 = vunpack.c.h.b16 %v2951
    %v2960 = vunpack.c.l.b16 %v2952
    %v2961 = vunpack.c.h.b16 %v2952
    %v2962 = vpack.c.b16 %v2956, %v2956
    %v2963 = vpack.c.b16 %v2957, %v2957
    %v2964 = vpack.c.b16 %v2958, %v2958
    %v2965 = vpack.c.b16 %v2959, %v2959
    %v2966 = vpack.c.b16 %v2960, %v2960
    %v2967 = vpack.c.b16 %v2961, %v2961
    %2974 = vmatpush.bf16.xpose.msra.mxu0 0
    %2975 = vmatpush.bf16.xpose.msra.mxu0 0
    %2976 = vmatpush.bf16.xpose.msra.mxu0 0
    %2977 = vmatpush.bf16.xpose.msra.mxu0 0
    %2978 = vmatpush.bf16.xpose.msra.mxu0 0
    %2979 = vmatpush.bf16.xpose.msra.mxu0 0
    %2980 = vmatpush.bf16.xpose.msra.mxu0 0
    %2981 = vmatpush.bf16.xpose.msra.mxu0 %v2962
    %2982 = vmatmul.bf16.gmra.mxu0 %v2944
    %v2983 = vpop.f32.mrf.mxu0
    %v2984 = vadd.f32 0.0, %v2983
    %v2985 = vpop.f32.mrf.mxu0
    %2986 = vdwg.mxu0
    %2987 = vmatpush.bf16.xpose.msra.mxu0 0
    %2988 = vmatpush.bf16.xpose.msra.mxu0 0
    %2989 = vmatpush.bf16.xpose.msra.mxu0 0
    %2990 = vmatpush.bf16.xpose.msra.mxu0 0
    %2991 = vmatpush.bf16.xpose.msra.mxu0 0
    %2992 = vmatpush.bf16.xpose.msra.mxu0 0
    %2993 = vmatpush.bf16.xpose.msra.mxu0 0
    %2994 = vmatpush.bf16.xpose.msra.mxu0 %v2963
    %2995 = vmatmul.bf16.gmra.mxu0 %v2945
    %v2996 = vpop.f32.mrf.mxu0
    %v2997 = vadd.f32 %v2984, %v2996
    %v2998 = vpop.f32.mrf.mxu0
    %2999 = vdwg.mxu0
    %3000 = vmatpush.bf16.xpose.msra.mxu0 0
    %3001 = vmatpush.bf16.xpose.msra.mxu0 0
    %3002 = vmatpush.bf16.xpose.msra.mxu0 0
    %3003 = vmatpush.bf16.xpose.msra.mxu0 0
    %3004 = vmatpush.bf16.xpose.msra.mxu0 0
    %3005 = vmatpush.bf16.xpose.msra.mxu0 0
    %3006 = vmatpush.bf16.xpose.msra.mxu0 0
    %3007 = vmatpush.bf16.xpose.msra.mxu0 %v2964
    %3008 = vmatmul.bf16.gmra.mxu0 %v2946
    %v3009 = vpop.f32.mrf.mxu0
    %v3010 = vadd.f32 %v2997, %v3009
    %v3011 = vpop.f32.mrf.mxu0
    %3012 = vdwg.mxu0
    %3013 = vmatpush.bf16.xpose.msra.mxu0 0
    %3014 = vmatpush.bf16.xpose.msra.mxu0 0
    %3015 = vmatpush.bf16.xpose.msra.mxu0 0
    %3016 = vmatpush.bf16.xpose.msra.mxu0 0
    %3017 = vmatpush.bf16.xpose.msra.mxu0 0
    %3018 = vmatpush.bf16.xpose.msra.mxu0 0
    %3019 = vmatpush.bf16.xpose.msra.mxu0 0
    %3020 = vmatpush.bf16.xpose.msra.mxu0 %v2965
    %3021 = vmatmul.bf16.gmra.mxu0 %v2947
    %v3022 = vpop.f32.mrf.mxu0
    %v3023 = vadd.f32 %v3010, %v3022
    %v3024 = vpop.f32.mrf.mxu0
    %3025 = vdwg.mxu0
    %3026 = vmatpush.bf16.xpose.msra.mxu0 0
    %3027 = vmatpush.bf16.xpose.msra.mxu0 0
    %3028 = vmatpush.bf16.xpose.msra.mxu0 0
    %3029 = vmatpush.bf16.xpose.msra.mxu0 0
    %3030 = vmatpush.bf16.xpose.msra.mxu0 0
    %3031 = vmatpush.bf16.xpose.msra.mxu0 0
    %3032 = vmatpush.bf16.xpose.msra.mxu0 0
    %3033 = vmatpush.bf16.xpose.msra.mxu0 %v2966
    %3034 = vmatmul.bf16.gmra.mxu0 %v2948
    %v3035 = vpop.f32.mrf.mxu0
    %v3036 = vadd.f32 %v3023, %v3035
    %v3037 = vpop.f32.mrf.mxu0
    %3038 = vdwg.mxu0
    %3039 = vmatpush.bf16.xpose.msra.mxu0 0
    %3040 = vmatpush.bf16.xpose.msra.mxu0 0
    %3041 = vmatpush.bf16.xpose.msra.mxu0 0
    %3042 = vmatpush.bf16.xpose.msra.mxu0 0
    %3043 = vmatpush.bf16.xpose.msra.mxu0 0
    %3044 = vmatpush.bf16.xpose.msra.mxu0 0
    %3045 = vmatpush.bf16.xpose.msra.mxu0 0
    %3046 = vmatpush.bf16.xpose.msra.mxu0 %v2967
    %3047 = vmatmul.bf16.gmra.mxu0 %v2949
    %v3048 = vpop.f32.mrf.mxu0
    %v3049 = vadd.f32 %v3036, %v3048
    %v3050 = vpop.f32.mrf.mxu0
    %3051 = vdwg.mxu0
    %v3052 = vsel %vm278, %v3049, 0.0
    %v3054 = vperm.slane %v722, 0
    %v3056 = vadd.f32 %v3052, %v3054
    %3057 = vst [vmem:[#allocation11] sm:$0xff] %v3056
    // Predicated region
    $region42: #{tpu_custom_call.1} parent=1 // pred_check
      _
    $region43: #{tpu_custom_call.1} parent=1 // pred_check_branch
      %3059 = sbr.rel (0) target = $region45
    $region44: #{tpu_custom_call.1} parent=1 // pred_region
      %3061 = vsyncadd [#allocation4], 0
      %s3063 = sshll.u32 [#allocation11], 4
      %s3064 = int_to_ptr.vmem [resolvable:$true] %s3063
      %s3065 = sshll.u32 %s5, 4
      %s3066 = int_to_ptr.hbm [resolvable:$true] %s3065
      %3068 = dma.vmem_to_hbm [thread:$0]  %s3064, 128, %s3066, [#allocation4]
    $region45: #{tpu_custom_call.1} parent=1 // pred_fallthru
      _
    // Predicated region
    $region46: #{tpu_custom_call.1} parent=1 // pred_check
      _
    $region47: #{tpu_custom_call.1} parent=1 // pred_check_branch
      %3070 = sbr.rel (0) target = $region49
    $region48: #{tpu_custom_call.1} parent=1 // pred_region
      %3072 = dma.done [#allocation4], 128
    $region49: #{tpu_custom_call.1} parent=1 // pred_fallthru
      _
    %3073 = vsyncpa [#allocation3], 1
    %3074 = vsyncpa [#allocation6], 1
    %3075 = vsyncpa [#allocation9], 1
    %3076 = vsyncpa [#allocation4], 1

</llo_original>
